<compile_context>
chip_gen: v7x
topology: tpu7x:2x2x1
jax: 0.10.0
libtpu: 0.0.40
codegen_flags: <defaults>
</compile_context>

<pallas_src>
import functools
import math

import jax
import jax.numpy as jnp
import numpy as np
from jax.experimental import pallas as pl
from jax.experimental.pallas import tpu as pltpu


def _round_up(x, m):
    return (x + m - 1) // m * m


def _encoder_kernel(emb_ref, w_e2h_ref, b_e2h_ref, convw_ref, convb_ref,
                    w_h2e_ref, b_h2e_ref, conved_ref, combined_ref, xp_ref,
                    *, kernel_size, seq_len, block_batch, hidden_size, left_pad,
                    resident_weights, fuse_taps):
    """One (batch_block, layer) grid step.

    emb_ref:      (Bt*L, E)  f32 token+pos embeddings for this batch block
    w_e2h_ref:    (E, H)     b_e2h_ref: (1, H) f32
    convw_ref:    resident: (num_layers, K*H, 2H)   streamed: (K*H, 2H)
    convb_ref:    resident: (num_layers, 1, 2H) f32 streamed: (1, 2H) f32
    w_h2e_ref:    (H, E)     b_h2e_ref: (1, E) f32
    conved_ref, combined_ref: (Bt*L, E) outputs (written only at the last layer)
    xp_ref:       (Bt, Lp, H) f32 persistent zero-padded activation scratch;
                  data rows live at [left_pad : left_pad+L] (8-aligned).
    """
    layer = pl.program_id(1)
    num_layers = pl.num_programs(1)

    pad = (kernel_size - 1) // 2
    L = seq_len
    H = hidden_size
    Bt = block_batch
    rows = Bt * L
    data0 = left_pad                          # first data row in the padded scratch
    lp_total = xp_ref.shape[1]
    right_start = data0 + L
    right_pad = lp_total - right_start
    scale = jnp.float32(math.sqrt(0.5))
    wdt = w_e2h_ref.dtype                     # matmul-input dtype (f32 or bf16)

    @pl.when(layer == 0)
    def _init():
        # Zero ONLY the pad rows; data rows are overwritten by emb2hid just below.
        if pad > 0:
            xp_ref[:, pl.ds(0, left_pad), :] = jnp.zeros(
                (Bt, left_pad, H), jnp.float32)
            if right_pad > 0:
                xp_ref[:, pl.ds(right_start, right_pad), :] = jnp.zeros(
                    (Bt, right_pad, H), jnp.float32)
        x0 = jnp.dot(emb_ref[...].astype(wdt), w_e2h_ref[...],
                     preferred_element_type=jnp.float32) + b_e2h_ref[...]
        xp_ref[:, pl.ds(data0, L), :] = x0.reshape(Bt, L, H)

    xpv = xp_ref[...]                                            # (Bt, Lp, H) f32
    x = xpv[:, data0:data0 + L, :].reshape(rows, H)              # residual input

    # Current layer's conv weights / bias (resident slab indexed in-kernel, or the
    # streamed per-layer block).
    w_l = convw_ref[layer] if resident_weights else convw_ref[...]   # (K*H, 2H)
    b_l = convb_ref[layer] if resident_weights else convb_ref[...]   # (1, 2H)

    if fuse_taps:
        # im2col: K lane-concatenated shifted views (cast to matmul dtype BEFORE the
        # concat so the slab is built once) -> ONE fused MXU matmul (contraction K*H).
        slab = jnp.concatenate(
            [xpv[:, data0 - pad + k:data0 - pad + k + L, :].astype(wdt)
             for k in range(kernel_size)],
            axis=-1).reshape(rows, kernel_size * H)
        out = jnp.dot(slab, w_l, preferred_element_type=jnp.float32) + b_l
    else:
        # Un-fused per-tap path (v5e-friendly): K accumulating H-contraction matmuls,
        # no slab materialization.
        acc = jnp.zeros((rows, 2 * H), jnp.float32)
        for k in range(kernel_size):
            xk = xpv[:, data0 - pad + k:data0 - pad + k + L, :].astype(
                wdt).reshape(rows, H)
            wk = w_l[k * H:(k + 1) * H, :]
            acc = acc + jnp.dot(xk, wk, preferred_element_type=jnp.float32)
        out = acc + b_l

    a = out[:, :H]                                               # GLU split on lane boundary
    b = out[:, H:]
    x_new = (a * jax.nn.sigmoid(b) + x) * scale                  # GLU + residual, f32 math

    @pl.when(layer != num_layers - 1)
    def _writeback():
        # Aligned write-back; skipped on the final layer (finalize consumes x_new directly).
        xp_ref[:, pl.ds(data0, L), :] = x_new.reshape(Bt, L, H)

    @pl.when(layer == num_layers - 1)
    def _finalize():
        emb = emb_ref[...]
        conved = jnp.dot(x_new.astype(wdt), w_h2e_ref[...],
                         preferred_element_type=jnp.float32) + b_h2e_ref[...]
        conved_ref[...] = conved
        combined_ref[...] = (conved + emb) * scale


def cnn_encoder_forward(src, params, *, kernel_size, num_layers,
                        block_batch=None, compute_dtype=jnp.float32,
                        fuse_taps=True):
    """src: (B, L) int32 token ids. Returns (conved, combined, embedded)."""
    assert kernel_size % 2 == 1, "Kernel size must be odd!"
    tok_table = params["tok_emb"]          # (vocab, E)
    pos_table = params["pos_emb"]          # (max_length, E)
    B, L = src.shape
    E = tok_table.shape[1]
    H = params["w_e2h"].shape[1]
    pad = (kernel_size - 1) // 2

    if block_batch is None:
        block_batch = B                    # largest M; pick Bt*L >= 256 when B*L allows
    assert B % block_batch == 0, "block_batch must divide batch size"
    nb = B // block_batch

    # Padded activation scratch layout: data rows start at an 8-aligned offset so the
    # per-layer write-back is an unmasked sublane-aligned store.  (L a multiple of 8 and
    # H, E multiples of 128 keep every access on the lane-dense fast path.)
    left_pad = _round_up(pad, 8) if pad > 0 else 0
    lp_total = left_pad + _round_up(L + pad, 8)

    # Embedding lookups + positional add stay in plain JAX (gather glue).
    # TODO(synk): dropout is identity (eval mode); no PRNG masking is applied.
    tok_embedded = tok_table[src]                               # (B, L, E)
    pos_embedded = pos_table[jnp.arange(L)][None, :, :]         # (1, L, E)
    embedded = (tok_embedded + pos_embedded).astype(jnp.float32)
    emb2d = embedded.reshape(B * L, E)

    # Matmul-input dtype (bf16 halves weight traffic and hits MXU peak on v6e/v7x);
    # accumulation and all GLU/residual math stay f32.
    w_e2h = params["w_e2h"].astype(compute_dtype)
    w_h2e = params["w_h2e"].astype(compute_dtype)
    conv_w = params["conv_w"].astype(compute_dtype).reshape(
        num_layers, kernel_size * H, 2 * H)                     # fused im2col weights
    conv_b = params["conv_b"].reshape(num_layers, 1, 2 * H).astype(jnp.float32)
    b_e2h = params["b_e2h"].astype(jnp.float32)
    b_h2e = params["b_h2e"].astype(jnp.float32)

    itemsize = jnp.dtype(compute_dtype).itemsize
    rows = block_batch * L

    # Keep the whole conv weight slab VMEM-resident when it fits: loaded once, never
    # re-streamed when the layer index resets at a new batch block.
    resident_weights = conv_w.size * itemsize <= 16 * 1024 * 1024

    if resident_weights:
        convw_spec = pl.BlockSpec((num_layers, kernel_size * H, 2 * H),
                                  lambda b, l: (0, 0, 0))
        convb_spec = pl.BlockSpec((num_layers, 1, 2 * H), lambda b, l: (0, 0, 0))
    else:
        convw_spec = pl.BlockSpec((None, kernel_size * H, 2 * H),
                                  lambda b, l: (l, 0, 0))
        convb_spec = pl.BlockSpec((None, 1, 2 * H), lambda b, l: (l, 0, 0))

    kernel = functools.partial(
        _encoder_kernel, kernel_size=kernel_size, seq_len=L,
        block_batch=block_batch, hidden_size=H, left_pad=left_pad,
        resident_weights=resident_weights, fuse_taps=fuse_taps)

    # Explicit VMEM sizing with headroom, capped at 48 MiB so the kernel also fits a
    # v7x TensorCore (64 MiB physical VMEM).
    f32b = 4
    vmem_est = (
        block_batch * lp_total * H * f32b                       # xp activation scratch
        + 2 * rows * E * f32b                                   # embedded block (dbuf)
        + 2 * 2 * rows * E * f32b                               # two output blocks (dbuf)
        + 2 * (E * H + H * E) * itemsize                        # e2h / h2e weights
        + 2 * (H + E) * f32b                                    # e2h / h2e biases
        + (1 if resident_weights else 2) * conv_w.size * itemsize
        + 2 * conv_b.size * f32b)
    vmem_limit = int(min(48 * 1024 * 1024, max(32 * 1024 * 1024, 2 * vmem_est)))

    flops = 2 * B * L * (E * H + num_layers * kernel_size * H * 2 * H + H * E)
    bytes_accessed = int(
        (1 if resident_weights else nb) * conv_w.size * itemsize
        + (w_e2h.size + w_h2e.size) * itemsize
        + f32b * (conv_b.size + b_e2h.size + b_h2e.size)
        + f32b * emb2d.size + 2 * f32b * B * L * E)

    conved, combined = pl.pallas_call(
        kernel,
        grid=(nb, num_layers),
        in_specs=[
            pl.BlockSpec((rows, E), lambda b, l: (b, 0)),                   # embedded rows
            pl.BlockSpec((E, H), lambda b, l: (0, 0)),                      # w_e2h
            pl.BlockSpec((1, H), lambda b, l: (0, 0)),                      # b_e2h
            convw_spec,                                                     # conv_w
            convb_spec,                                                     # conv_b
            pl.BlockSpec((H, E), lambda b, l: (0, 0)),                      # w_h2e
            pl.BlockSpec((1, E), lambda b, l: (0, 0)),                      # b_h2e
        ],
        out_specs=[
            pl.BlockSpec((rows, E), lambda b, l: (b, 0)),
            pl.BlockSpec((rows, E), lambda b, l: (b, 0)),
        ],
        out_shape=[
            jax.ShapeDtypeStruct((B * L, E), jnp.float32),
            jax.ShapeDtypeStruct((B * L, E), jnp.float32),
        ],
        scratch_shapes=[pltpu.VMEM((block_batch, lp_total, H), jnp.float32)],
        compiler_params=pltpu.CompilerParams(
            dimension_semantics=("parallel", "arbitrary"),
            vmem_limit_bytes=vmem_limit),
        cost_estimate=pl.CostEstimate(
            flops=flops,
            transcendentals=B * L * H * num_layers,
            bytes_accessed=bytes_accessed),
    )(emb2d, w_e2h, b_e2h, conv_w, conv_b, w_h2e, b_h2e)

    return conved.reshape(B, L, E), combined.reshape(B, L, E), embedded


def _reference_forward(embedded, params, *, kernel_size, num_layers):
    """Pure-JAX reference mirroring the PyTorch semantics (for sanity checking)."""
    scale = jnp.float32(math.sqrt(0.5))
    H = params["w_e2h"].shape[1]
    pad = (kernel_size - 1) // 2
    L = embedded.shape[1]

    x = embedded @ params["w_e2h"] + params["b_e2h"][0]     # (B, L, H)
    for layer in range(num_layers):
        xp = jnp.pad(x, ((0, 0), (pad, pad), (0, 0)))
        out = params["conv_b"][layer][None, None, :]
        for k in range(kernel_size):
            out = out + jnp.einsum("blh,hc->blc", xp[:, k:k + L],
                                   params["conv_w"][layer, k])
        a, b = out[..., :H], out[..., H:]
        x = (a * jax.nn.sigmoid(b) + x) * scale
    conved = x @ params["w_h2e"] + params["b_h2e"][0]
    combined = (conved + embedded) * scale
    return conved, combined


def init_params(key, *, vocab_size, embed_dim, hidden_size, num_layers,
                kernel_size, max_length):
    ks = jax.random.split(key, 7)
    s = 0.1
    return {
        "tok_emb": s * jax.random.normal(ks[0], (vocab_size, embed_dim), jnp.float32),
        "pos_emb": s * jax.random.normal(ks[1], (max_length, embed_dim), jnp.float32),
        "w_e2h": s * jax.random.normal(ks[2], (embed_dim, hidden_size), jnp.float32),
        "b_e2h": s * jax.random.normal(ks[3], (1, hidden_size), jnp.float32),
        # conv weights stored channel-last: (layers, K, H_in, 2H_out)
        "conv_w": s * jax.random.normal(
            ks[4], (num_layers, kernel_size, hidden_size, 2 * hidden_size), jnp.float32),
        "conv_b": s * jax.random.normal(ks[5], (num_layers, 2 * hidden_size), jnp.float32),
        "w_h2e": s * jax.random.normal(ks[6], (hidden_size, embed_dim), jnp.float32),
        "b_h2e": s * jax.random.normal(jax.random.fold_in(key, 99),
                                       (1, embed_dim), jnp.float32),
    }


if __name__ == "__main__":
    # Small, module-consistent shapes; feature dims lane-aligned (128), L multiple of 8.
    VOCAB, EMBED, HIDDEN = 50, 128, 128
    NUM_LAYERS, KERNEL = 2, 3          # kernel_size must be odd
    MAX_LEN = 100
    B, L = 16, 8                       # block_batch=B -> 128 MXU rows/step (nb=1)

    key = jax.random.PRNGKey(0)
    k_params, k_src = jax.random.split(key)
    params = init_params(k_params, vocab_size=VOCAB, embed_dim=EMBED,
                         hidden_size=HIDDEN, num_layers=NUM_LAYERS,
                         kernel_size=KERNEL, max_length=MAX_LEN)
    src = jax.random.randint(k_src, (B, L), 0, VOCAB, dtype=jnp.int32)

    # f32 fused (im2col) path, single full-size batch block (largest MXU M).
    conved, combined, embedded = cnn_encoder_forward(
        src, params, kernel_size=KERNEL, num_layers=NUM_LAYERS,
        block_batch=B, compute_dtype=jnp.float32, fuse_taps=True)
    jax.block_until_ready((conved, combined))

    conved_ref, combined_ref = _reference_forward(
        embedded, params, kernel_size=KERNEL, num_layers=NUM_LAYERS)
    np.testing.assert_allclose(np.asarray(conved), np.asarray(conved_ref),
                               rtol=1e-4, atol=1e-4)
    np.testing.assert_allclose(np.asarray(combined), np.asarray(combined_ref),
                               rtol=1e-4, atol=1e-4)

    # bf16 matmul-input path (f32 accumulation) -- the MXU-peak configuration for v6e/v7x.
    conved_bf, combined_bf, _ = cnn_encoder_forward(
        src, params, kernel_size=KERNEL, num_layers=NUM_LAYERS,
        block_batch=B, compute_dtype=jnp.bfloat16, fuse_taps=True)
    jax.block_until_ready((conved_bf, combined_bf))
    np.testing.assert_allclose(np.asarray(conved_bf), np.asarray(conved_ref),
                               rtol=5e-2, atol=2e-2)
    np.testing.assert_allclose(np.asarray(combined_bf), np.asarray(combined_ref),
                               rtol=5e-2, atol=2e-2)

    # Multi-batch-block run with the un-fused per-tap path (the v5e-preferred variant);
    # also exercises resident conv_w reuse and scratch re-init across batch blocks.
    conved_u, combined_u, _ = cnn_encoder_forward(
        src, params, kernel_size=KERNEL, num_layers=NUM_LAYERS,
        block_batch=B // 2, compute_dtype=jnp.float32, fuse_taps=False)
    jax.block_until_ready((conved_u, combined_u))
    np.testing.assert_allclose(np.asarray(conved_u), np.asarray(conved_ref),
                               rtol=1e-4, atol=1e-4)
    np.testing.assert_allclose(np.asarray(combined_u), np.asarray(combined_ref),
                               rtol=1e-4, atol=1e-4)

    print("KERNEL_OK")
</pallas_src>

<mosaic_0001>
module attributes {stable_mosaic.version = 11 : i64} {
  func.func @_encoder_kernel(%arg0: i32, %arg1: i32, %arg2: memref<128x128xf32, #tpu.memory_space<vmem>>, %arg3: memref<128x128xf32, #tpu.memory_space<vmem>>, %arg4: memref<1x128xf32, #tpu.memory_space<vmem>>, %arg5: memref<2x384x256xf32, #tpu.memory_space<vmem>>, %arg6: memref<2x1x256xf32, #tpu.memory_space<vmem>>, %arg7: memref<128x128xf32, #tpu.memory_space<vmem>>, %arg8: memref<1x128xf32, #tpu.memory_space<vmem>>, %arg9: memref<128x128xf32, #tpu.memory_space<vmem>>, %arg10: memref<128x128xf32, #tpu.memory_space<vmem>>, %arg11: memref<16x24x128xf32, #tpu.memory_space<vmem>>) attributes {dimension_semantics = [#tpu.dimension_semantics<parallel>, #tpu.dimension_semantics<arbitrary>], iteration_bounds = array<i64: 1, 2>, scalar_prefetch = 0 : i64, scratch_operands = 1 : i64, tpu.core_type = #tpu.core_type<tc>, window_params = [{transform_indices = @transform_0, window_bounds = array<i64: 128, 128>}, {pipeline_mode = #tpu.pipeline_mode<synchronous>, transform_indices = @transform_1, window_bounds = array<i64: 128, 128>}, {pipeline_mode = #tpu.pipeline_mode<synchronous>, transform_indices = @transform_2, window_bounds = array<i64: 1, 128>}, {pipeline_mode = #tpu.pipeline_mode<synchronous>, transform_indices = @transform_3, window_bounds = array<i64: 2, 384, 256>}, {pipeline_mode = #tpu.pipeline_mode<synchronous>, transform_indices = @transform_4, window_bounds = array<i64: 2, 1, 256>}, {pipeline_mode = #tpu.pipeline_mode<synchronous>, transform_indices = @transform_5, window_bounds = array<i64: 128, 128>}, {pipeline_mode = #tpu.pipeline_mode<synchronous>, transform_indices = @transform_6, window_bounds = array<i64: 1, 128>}, {transform_indices = @transform_7, window_bounds = array<i64: 128, 128>}, {transform_indices = @transform_8, window_bounds = array<i64: 128, 128>}]} {
    %c0_i32 = arith.constant 0 : i32
    %0 = arith.cmpi eq, %arg1, %c0_i32 : i32
    %1 = arith.extui %0 : i1 to i32
    %c0_i32_0 = arith.constant 0 : i32
    %2 = arith.cmpi ne, %1, %c0_i32_0 : i32
    scf.if %2 {
      %cst_13 = arith.constant 0.000000e+00 : f32
      %37 = vector.broadcast %cst_13 : f32 to vector<16x8x128xf32>
      %c0_14 = arith.constant 0 : index
      %c0_15 = arith.constant 0 : index
      %c0_16 = arith.constant 0 : index
      %38 = vector.load %arg11[%c0_14, %c0_15, %c0_16] : memref<16x24x128xf32, #tpu.memory_space<vmem>>, vector<16x8x128xf32>
      tpu.vector_store %arg11[%c0_14, %c0_15, %c0_16], %37 {strides = array<i32>} : memref<16x24x128xf32, #tpu.memory_space<vmem>>, vector<16x8x128xf32>,
      %cst_17 = arith.constant 0.000000e+00 : f32
      %39 = vector.broadcast %cst_17 : f32 to vector<16x8x128xf32>
      %c0_18 = arith.constant 0 : index
      %c16 = arith.constant 16 : index
      %c0_19 = arith.constant 0 : index
      %40 = vector.load %arg11[%c0_18, %c16, %c0_19] : memref<16x24x128xf32, #tpu.memory_space<vmem>>, vector<16x8x128xf32>
      tpu.vector_store %arg11[%c0_18, %c16, %c0_19], %39 {strides = array<i32>} : memref<16x24x128xf32, #tpu.memory_space<vmem>>, vector<16x8x128xf32>,
      %c0_20 = arith.constant 0 : index
      %c0_21 = arith.constant 0 : index
      %41 = vector.load %arg2[%c0_20, %c0_21] : memref<128x128xf32, #tpu.memory_space<vmem>>, vector<128x128xf32>
      %c0_22 = arith.constant 0 : index
      %c0_23 = arith.constant 0 : index
      %42 = vector.load %arg3[%c0_22, %c0_23] : memref<128x128xf32, #tpu.memory_space<vmem>>, vector<128x128xf32>
      %cst_24 = arith.constant dense<0.000000e+00> : vector<128x128xf32>
      %43 = tpu.matmul %41, %42, %cst_24 {dimension_numbers = #tpu.dot_dimension_numbers<[1], [0], [0], [1], [0, 0, 1, 1], [], []>} : vector<128x128xf32>, vector<128x128xf32>, vector<128x128xf32> -> vector<128x128xf32>
      %c0_25 = arith.constant 0 : index
      %c0_26 = arith.constant 0 : index
      %44 = vector.load %arg4[%c0_25, %c0_26] : memref<1x128xf32, #tpu.memory_space<vmem>>, vector<1x128xf32>
      %45 = vector.broadcast %44 : vector<1x128xf32> to vector<128x128xf32>
      %46 = arith.addf %43, %45 : vector<128x128xf32>
      %47 = vector.shape_cast %46 : vector<128x128xf32> to vector<16x8x128xf32>
      %c0_27 = arith.constant 0 : index
      %c8 = arith.constant 8 : index
      %c0_28 = arith.constant 0 : index
      %48 = vector.load %arg11[%c0_27, %c8, %c0_28] : memref<16x24x128xf32, #tpu.memory_space<vmem>>, vector<16x8x128xf32>
      tpu.vector_store %arg11[%c0_27, %c8, %c0_28], %47 {strides = array<i32>} : memref<16x24x128xf32, #tpu.memory_space<vmem>>, vector<16x8x128xf32>,
    } else {
    }
    %c0 = arith.constant 0 : index
    %c0_1 = arith.constant 0 : index
    %c0_2 = arith.constant 0 : index
    %3 = vector.load %arg11[%c0, %c0_1, %c0_2] : memref<16x24x128xf32, #tpu.memory_space<vmem>>, vector<16x24x128xf32>
    %4 = vector.extract_strided_slice %3 {offsets = [0, 8, 0], sizes = [16, 8, 128], strides = [1, 1, 1]} : vector<16x24x128xf32> to vector<16x8x128xf32>
    %5 = vector.shape_cast %4 : vector<16x8x128xf32> to vector<128x128xf32>
    %6 = arith.index_cast %arg1 : i32 to index
    %c0_3 = arith.constant 0 : index
    %c0_4 = arith.constant 0 : index
    %7 = vector.load %arg5[%6, %c0_3, %c0_4] : memref<2x384x256xf32, #tpu.memory_space<vmem>>, vector<1x384x256xf32>
    %8 = vector.shape_cast %7 : vector<1x384x256xf32> to vector<384x256xf32>
    %9 = arith.index_cast %arg1 : i32 to index
    %c0_5 = arith.constant 0 : index
    %c0_6 = arith.constant 0 : index
    %10 = vector.load %arg6[%9, %c0_5, %c0_6] : memref<2x1x256xf32, #tpu.memory_space<vmem>>, vector<1x1x256xf32>
    %11 = vector.shape_cast %10 : vector<1x1x256xf32> to vector<1x256xf32>
    %12 = vector.extract_strided_slice %3 {offsets = [0, 7, 0], sizes = [16, 8, 128], strides = [1, 1, 1]} : vector<16x24x128xf32> to vector<16x8x128xf32>
    %13 = vector.extract_strided_slice %3 {offsets = [0, 8, 0], sizes = [16, 8, 128], strides = [1, 1, 1]} : vector<16x24x128xf32> to vector<16x8x128xf32>
    %14 = vector.extract_strided_slice %3 {offsets = [0, 9, 0], sizes = [16, 8, 128], strides = [1, 1, 1]} : vector<16x24x128xf32> to vector<16x8x128xf32>
    %15 = tpu.concatenate %12, %13, %14 in 2 : vector<16x8x128xf32>, vector<16x8x128xf32>, vector<16x8x128xf32> -> vector<16x8x384xf32>
    %16 = vector.shape_cast %15 : vector<16x8x384xf32> to vector<128x384xf32>
    %cst = arith.constant dense<0.000000e+00> : vector<128x256xf32>
    %17 = tpu.matmul %16, %8, %cst {dimension_numbers = #tpu.dot_dimension_numbers<[1], [0], [0], [1], [0, 0, 1, 1], [], []>} : vector<128x384xf32>, vector<384x256xf32>, vector<128x256xf32> -> vector<128x256xf32>
    %18 = vector.broadcast %11 : vector<1x256xf32> to vector<128x256xf32>
    %19 = arith.addf %17, %18 : vector<128x256xf32>
    %20 = vector.extract_strided_slice %19 {offsets = [0, 0], sizes = [128, 128], strides = [1, 1]} : vector<128x256xf32> to vector<128x128xf32>
    %21 = vector.extract_strided_slice %19 {offsets = [0, 128], sizes = [128, 128], strides = [1, 1]} : vector<128x256xf32> to vector<128x128xf32>
    %22 = arith.negf %21 : vector<128x128xf32>
    %23 = math.exp %22 : vector<128x128xf32>
    %cst_7 = arith.constant 1.000000e+00 : f32
    %24 = vector.broadcast %cst_7 : f32 to vector<128x128xf32>
    %25 = arith.addf %24, %23 : vector<128x128xf32>
    %26 = arith.divf %24, %25 : vector<128x128xf32>
    %27 = arith.mulf %20, %26 : vector<128x128xf32>
    %28 = arith.addf %27, %5 : vector<128x128xf32>
    %cst_8 = arith.constant 0.707106769 : f32
    %29 = vector.broadcast %cst_8 : f32 to vector<128x128xf32>
    %30 = arith.mulf %28, %29 : vector<128x128xf32>
    %c1_i32 = arith.constant 1 : i32
    %31 = arith.cmpi ne, %arg1, %c1_i32 : i32
    %32 = arith.extui %31 : i1 to i32
    %c0_i32_9 = arith.constant 0 : i32
    %33 = arith.cmpi ne, %32, %c0_i32_9 : i32
    scf.if %33 {
      %37 = vector.shape_cast %30 : vector<128x128xf32> to vector<16x8x128xf32>
      %c0_13 = arith.constant 0 : index
      %c8 = arith.constant 8 : index
      %c0_14 = arith.constant 0 : index
      %38 = vector.load %arg11[%c0_13, %c8, %c0_14] : memref<16x24x128xf32, #tpu.memory_space<vmem>>, vector<16x8x128xf32>
      tpu.vector_store %arg11[%c0_13, %c8, %c0_14], %37 {strides = array<i32>} : memref<16x24x128xf32, #tpu.memory_space<vmem>>, vector<16x8x128xf32>,
    } else {
    }
    %c1_i32_10 = arith.constant 1 : i32
    %34 = arith.cmpi eq, %arg1, %c1_i32_10 : i32
    %35 = arith.extui %34 : i1 to i32
    %cst_11 = arith.constant 0.707106769 : f32
    %c0_i32_12 = arith.constant 0 : i32
    %36 = arith.cmpi ne, %35, %c0_i32_12 : i32
    scf.if %36 {
      %c0_13 = arith.constant 0 : index
      %c0_14 = arith.constant 0 : index
      %37 = vector.load %arg2[%c0_13, %c0_14] : memref<128x128xf32, #tpu.memory_space<vmem>>, vector<128x128xf32>
      %c0_15 = arith.constant 0 : index
      %c0_16 = arith.constant 0 : index
      %38 = vector.load %arg7[%c0_15, %c0_16] : memref<128x128xf32, #tpu.memory_space<vmem>>, vector<128x128xf32>
      %cst_17 = arith.constant dense<0.000000e+00> : vector<128x128xf32>
      %39 = tpu.matmul %30, %38, %cst_17 {dimension_numbers = #tpu.dot_dimension_numbers<[1], [0], [0], [1], [0, 0, 1, 1], [], []>} : vector<128x128xf32>, vector<128x128xf32>, vector<128x128xf32> -> vector<128x128xf32>
      %c0_18 = arith.constant 0 : index
      %c0_19 = arith.constant 0 : index
      %40 = vector.load %arg8[%c0_18, %c0_19] : memref<1x128xf32, #tpu.memory_space<vmem>>, vector<1x128xf32>
      %41 = vector.broadcast %40 : vector<1x128xf32> to vector<128x128xf32>
      %42 = arith.addf %39, %41 : vector<128x128xf32>
      %c0_20 = arith.constant 0 : index
      %c0_21 = arith.constant 0 : index
      %43 = vector.load %arg9[%c0_20, %c0_21] : memref<128x128xf32, #tpu.memory_space<vmem>>, vector<128x128xf32>
      tpu.vector_store %arg9[%c0_20, %c0_21], %42 {strides = array<i32>} : memref<128x128xf32, #tpu.memory_space<vmem>>, vector<128x128xf32>,
      %44 = arith.addf %42, %37 : vector<128x128xf32>
      %45 = vector.broadcast %cst_11 : f32 to vector<128x128xf32>
      %46 = arith.mulf %44, %45 : vector<128x128xf32>
      %c0_22 = arith.constant 0 : index
      %c0_23 = arith.constant 0 : index
      %47 = vector.load %arg10[%c0_22, %c0_23] : memref<128x128xf32, #tpu.memory_space<vmem>>, vector<128x128xf32>
      tpu.vector_store %arg10[%c0_22, %c0_23], %46 {strides = array<i32>} : memref<128x128xf32, #tpu.memory_space<vmem>>, vector<128x128xf32>,
    } else {
    }
    return
  }
  func.func @transform_0(%arg0: i32, %arg1: i32) -> (i32, i32) {
    %c0_i32 = arith.constant 0 : i32
    %c0_i32_0 = arith.constant 0 : i32
    return %arg0, %c0_i32 : i32, i32
  }
  func.func @transform_1(%arg0: i32, %arg1: i32) -> (i32, i32) {
    %c0_i32 = arith.constant 0 : i32
    %c0_i32_0 = arith.constant 0 : i32
    %c0_i32_1 = arith.constant 0 : i32
    return %c0_i32, %c0_i32_0 : i32, i32
  }
  func.func @transform_2(%arg0: i32, %arg1: i32) -> (i32, i32) {
    %c0_i32 = arith.constant 0 : i32
    %c0_i32_0 = arith.constant 0 : i32
    %c0_i32_1 = arith.constant 0 : i32
    return %c0_i32, %c0_i32_0 : i32, i32
  }
  func.func @transform_3(%arg0: i32, %arg1: i32) -> (i32, i32, i32) {
    %c0_i32 = arith.constant 0 : i32
    %c0_i32_0 = arith.constant 0 : i32
    %c0_i32_1 = arith.constant 0 : i32
    %c0_i32_2 = arith.constant 0 : i32
    return %c0_i32, %c0_i32_0, %c0_i32_1 : i32, i32, i32
  }
  func.func @transform_4(%arg0: i32, %arg1: i32) -> (i32, i32, i32) {
    %c0_i32 = arith.constant 0 : i32
    %c0_i32_0 = arith.constant 0 : i32
    %c0_i32_1 = arith.constant 0 : i32
    %c0_i32_2 = arith.constant 0 : i32
    return %c0_i32, %c0_i32_0, %c0_i32_1 : i32, i32, i32
  }
  func.func @transform_5(%arg0: i32, %arg1: i32) -> (i32, i32) {
    %c0_i32 = arith.constant 0 : i32
    %c0_i32_0 = arith.constant 0 : i32
    %c0_i32_1 = arith.constant 0 : i32
    return %c0_i32, %c0_i32_0 : i32, i32
  }
  func.func @transform_6(%arg0: i32, %arg1: i32) -> (i32, i32) {
    %c0_i32 = arith.constant 0 : i32
    %c0_i32_0 = arith.constant 0 : i32
    %c0_i32_1 = arith.constant 0 : i32
    return %c0_i32, %c0_i32_0 : i32, i32
  }
  func.func @transform_7(%arg0: i32, %arg1: i32) -> (i32, i32) {
    %c0_i32 = arith.constant 0 : i32
    %c0_i32_0 = arith.constant 0 : i32
    return %arg0, %c0_i32 : i32, i32
  }
  func.func @transform_8(%arg0: i32, %arg1: i32) -> (i32, i32) {
    %c0_i32 = arith.constant 0 : i32
    %c0_i32_0 = arith.constant 0 : i32
    return %arg0, %c0_i32 : i32, i32
  }
}

</mosaic_0001>

<llo_original>
// kernel: tpu_custom_call.1
$region0: #{tpu_custom_call.1}
  #allocation0 [shape = 'u32[]', space=smem, size = 0x4, offset = 0x4, fixed_abs, tag = 'smem constant byte address 0x4 - core index']
  #allocation1 [shape = 'u32[144,128]{1,0:T(1,128)}', space=vmem, size = 0x12000, scoped, tag = 'internal scratch']
  #allocation2 [shape = 'f32[16,24,128]{2,1,0:T(8,128)}', space=vmem, size = 0x30000, scoped, tag = 'scratch operand']
  %s0 = inlined_call_operand.hbm [shape: f32[128,128], index: 0, kind: input, shape index: {}]
  %s1 = inlined_call_operand.hbm [shape: f32[128,128], index: 1, kind: input, shape index: {}]
  %s2 = inlined_call_operand.vmem [shape: f32[1,128], index: 2, kind: input, shape index: {}]
  %s3 = inlined_call_operand.hbm [shape: f32[2,384,256], index: 3, kind: input, shape index: {}]
  %s4 = inlined_call_operand.vmem [shape: f32[2,1,256], index: 4, kind: input, shape index: {}]
  %s5 = inlined_call_operand.hbm [shape: f32[128,128], index: 5, kind: input, shape index: {}]
  %s6 = inlined_call_operand.vmem [shape: f32[1,128], index: 6, kind: input, shape index: {}]
  %s7 = inlined_call_operand.hbm [shape: f32[128,128], index: 7, kind: output, shape index: {0}]
  %s8 = inlined_call_operand.hbm [shape: f32[128,128], index: 8, kind: output, shape index: {1}]
  %9 = xla_tuple %s7, %s8
  %s10 = sld [smem:[#allocation0]]
  $region97: #{tpu_custom_call.1} parent=0
    _
  %s12 = ssub.s32 1, %s10
  %s13 = scalar_select 0, %s12, %s10
  $region1: #{tpu_custom_call.1} parent=0
    #allocation3 [shape = 'u8[65536]{0}', space=vmem, size = 0x10000, scoped, tag = 'input window, operand 0, single buffered']
    #allocation4 [shape = 's32[2]{0}', space=sflag, size = 0x8, scoped, tag = 'scoped memory for tpu_custom_call.1']
    #allocation5 [shape = 's32[2]{0}', space=sflag, size = 0x8, scoped, tag = 'scoped memory for tpu_custom_call.1']
    #allocation6 [shape = 'u8[65536]{0}', space=vmem, size = 0x10000, scoped, tag = 'input window, operand 1, single buffered']
    #allocation7 [shape = 's32[1]{0}', space=sflag, size = 0x4, scoped, tag = 'scoped memory for tpu_custom_call.1']
    #allocation8 [shape = 'u8[786432]{0}', space=vmem, size = 0xc0000, scoped, tag = 'input window, operand 3, single buffered']
    #allocation9 [shape = 'u8[65536]{0}', space=vmem, size = 0x10000, scoped, tag = 'input window, operand 5, single buffered']
    #allocation10 [shape = 's32[1]{0}', space=sflag, size = 0x4, scoped, tag = 'scoped memory for tpu_custom_call.1']
    #allocation11 [shape = 'u8[65536]{0}', space=vmem, size = 0x10000, scoped, tag = 'output window, operand 0, single buffered']
    #allocation12 [shape = 'u8[65536]{0}', space=vmem, size = 0x10000, scoped, tag = 'output window, operand 1, single buffered']
    #allocation13 [shape = 's32[1]{0}', space=sflag, size = 0x4, scoped, tag = 'scoped memory for tpu_custom_call.1']
    %14 = vsyncpa [#allocation4], 0
    %15 = vsyncpa [#allocation7], 0
    %16 = vsyncpa [#allocation10], 0
    %17 = vsyncpa [#allocation5], 0
    %18 = vsyncpa [#allocation13], 0
    loop: start=0, step=1, limit=4
    $region2: #{tpu_custom_call.1} parent=1 // loop_pre_header
      _
    $region3: #{tpu_custom_call.1} parent=1 // loop_header
      %s20 = sphi 0, %s24
      %p21 = scmp.ge.s32.totalorder %s20, 4
      %s27 = sphi 0, %s39
      %s28 = sphi 0, %s35
      %s29 = sphi 0, %s27
      %s30 = sphi 0, %s28
      %s31 = sphi 0, %s29
      %s32 = sphi 0, %s30
      %s42 = sphi 0, %s44
      %s45 = sphi 0, %s42
      %s46 = sphi 0, %s45
      %s62 = sphi 0, %s46
      %s66 = sphi 0, %s66
      %s68 = sphi 0, %s66
      %s69 = sphi 0, %s68
      %s83 = sphi 0, %s69
      %s87 = sphi 0, %s87
      %s89 = sphi 0, %s87
      %s90 = sphi 0, %s89
      %s104 = sphi 0, %s90
      %s108 = sphi 0, %s108
      %s110 = sphi 0, %s108
      %s111 = sphi 0, %s110
      %s125 = sphi 0, %s111
      %s129 = sphi 0, %s129
      %s131 = sphi 0, %s129
      %s132 = sphi 0, %s131
      %s146 = sphi 0, %s132
      %s150 = sphi 0, %s150
      %s152 = sphi 0, %s150
      %s153 = sphi 0, %s152
      %s167 = sphi 0, %s153
      %s171 = sphi 0, %s171
      %s173 = sphi 0, %s171
      %s174 = sphi 0, %s173
      %s188 = sphi 0, %s174
      %s194 = sphi 0, %s196
      %s197 = sphi 0, %s194
      %s198 = sphi 0, %s197
      %s214 = sphi 0, %s198
      %s220 = sphi 0, %s222
      %s223 = sphi 0, %s220
      %s224 = sphi 0, %s223
      %s240 = sphi 0, %s224
    $region4: #{tpu_custom_call.1} parent=1 // loop_header_branch
      %23 = sbr.rel (%p21) target = $region8
    $region5: #{tpu_custom_call.1} parent=1 // loop_body
      %s25 = ssub.s32 %s20, 1
      %s26 = ssub.s32 %s20, 2
      %s33 = sadd.s32 1, %s28
      %p34 = scmp.ge.s32.totalorder %s33, 2
      %s35 = scalar_select %p34, 0, %s33
      %s36 = sadd.s32 1, %s27
      %s37 = scalar_select %p34, %s36, %s27
      %p38 = scmp.ge.s32.totalorder %s37, 1
      %s39 = scalar_select %p38, 0, %s37
      %s40 = ssub.s32 %s27, %s39
      %p41 = scmp.eq.s32.totalorder %s40, 0
      %s43 = sadd.s32 %s42, 1
      %s44 = scalar_select %p41, %s42, %s43
      %p47 = pneg %p41
      %p48 = scmp.eq.s32.totalorder %s20, 1
      %p49 = por %p47, %p48
      %p50 = scmp.ne.s32.totalorder %s42, %s45
      %p51 = scmp.eq.s32.totalorder %s20, 0
      %p52 = por %p50, %p51
      %p53 = scmp.ne.s32.totalorder %s42, %s45
      %p54 = scmp.eq.s32.totalorder %s25, 1
      %p55 = por %p53, %p54
      %p56 = scmp.ne.s32.totalorder %s45, %s46
      %p57 = scmp.eq.s32.totalorder %s25, 0
      %p58 = por %p56, %p57
      %p59 = scmp.ne.s32.totalorder %s45, %s46
      %p60 = scmp.eq.s32.totalorder %s26, 1
      %p61 = por %p59, %p60
      %p63 = scmp.ne.s32.totalorder %s46, %s62
      %p64 = scmp.eq.s32.totalorder %s26, 0
      %p65 = por %p63, %p64
      %s67 = sadd.s32 %s66, 1
      %p70 = scmp.eq.s32.totalorder %s20, 1
      %p71 = scmp.ne.s32.totalorder %s66, %s68
      %p72 = scmp.eq.s32.totalorder %s20, 0
      %p73 = por %p71, %p72
      %p74 = scmp.ne.s32.totalorder %s66, %s68
      %p75 = scmp.eq.s32.totalorder %s25, 1
      %p76 = por %p74, %p75
      %p77 = scmp.ne.s32.totalorder %s68, %s69
      %p78 = scmp.eq.s32.totalorder %s25, 0
      %p79 = por %p77, %p78
      %p80 = scmp.ne.s32.totalorder %s68, %s69
      %p81 = scmp.eq.s32.totalorder %s26, 1
      %p82 = por %p80, %p81
      %p84 = scmp.ne.s32.totalorder %s69, %s83
      %p85 = scmp.eq.s32.totalorder %s26, 0
      %p86 = por %p84, %p85
      %s88 = sadd.s32 %s87, 1
      %p91 = scmp.eq.s32.totalorder %s20, 1
      %p92 = scmp.ne.s32.totalorder %s87, %s89
      %p93 = scmp.eq.s32.totalorder %s20, 0
      %p94 = por %p92, %p93
      %p95 = scmp.ne.s32.totalorder %s87, %s89
      %p96 = scmp.eq.s32.totalorder %s25, 1
      %p97 = por %p95, %p96
      %p98 = scmp.ne.s32.totalorder %s89, %s90
      %p99 = scmp.eq.s32.totalorder %s25, 0
      %p100 = por %p98, %p99
      %p101 = scmp.ne.s32.totalorder %s89, %s90
      %p102 = scmp.eq.s32.totalorder %s26, 1
      %p103 = por %p101, %p102
      %p105 = scmp.ne.s32.totalorder %s90, %s104
      %p106 = scmp.eq.s32.totalorder %s26, 0
      %p107 = por %p105, %p106
      %s109 = sadd.s32 %s108, 1
      %p112 = scmp.eq.s32.totalorder %s20, 1
      %p113 = scmp.ne.s32.totalorder %s108, %s110
      %p114 = scmp.eq.s32.totalorder %s20, 0
      %p115 = por %p113, %p114
      %p116 = scmp.ne.s32.totalorder %s108, %s110
      %p117 = scmp.eq.s32.totalorder %s25, 1
      %p118 = por %p116, %p117
      %p119 = scmp.ne.s32.totalorder %s110, %s111
      %p120 = scmp.eq.s32.totalorder %s25, 0
      %p121 = por %p119, %p120
      %p122 = scmp.ne.s32.totalorder %s110, %s111
      %p123 = scmp.eq.s32.totalorder %s26, 1
      %p124 = por %p122, %p123
      %p126 = scmp.ne.s32.totalorder %s111, %s125
      %p127 = scmp.eq.s32.totalorder %s26, 0
      %p128 = por %p126, %p127
      %s130 = sadd.s32 %s129, 1
      %p133 = scmp.eq.s32.totalorder %s20, 1
      %p134 = scmp.ne.s32.totalorder %s129, %s131
      %p135 = scmp.eq.s32.totalorder %s20, 0
      %p136 = por %p134, %p135
      %p137 = scmp.ne.s32.totalorder %s129, %s131
      %p138 = scmp.eq.s32.totalorder %s25, 1
      %p139 = por %p137, %p138
      %p140 = scmp.ne.s32.totalorder %s131, %s132
      %p141 = scmp.eq.s32.totalorder %s25, 0
      %p142 = por %p140, %p141
      %p143 = scmp.ne.s32.totalorder %s131, %s132
      %p144 = scmp.eq.s32.totalorder %s26, 1
      %p145 = por %p143, %p144
      %p147 = scmp.ne.s32.totalorder %s132, %s146
      %p148 = scmp.eq.s32.totalorder %s26, 0
      %p149 = por %p147, %p148
      %s151 = sadd.s32 %s150, 1
      %p154 = scmp.eq.s32.totalorder %s20, 1
      %p155 = scmp.ne.s32.totalorder %s150, %s152
      %p156 = scmp.eq.s32.totalorder %s20, 0
      %p157 = por %p155, %p156
      %p158 = scmp.ne.s32.totalorder %s150, %s152
      %p159 = scmp.eq.s32.totalorder %s25, 1
      %p160 = por %p158, %p159
      %p161 = scmp.ne.s32.totalorder %s152, %s153
      %p162 = scmp.eq.s32.totalorder %s25, 0
      %p163 = por %p161, %p162
      %p164 = scmp.ne.s32.totalorder %s152, %s153
      %p165 = scmp.eq.s32.totalorder %s26, 1
      %p166 = por %p164, %p165
      %p168 = scmp.ne.s32.totalorder %s153, %s167
      %p169 = scmp.eq.s32.totalorder %s26, 0
      %p170 = por %p168, %p169
      %s172 = sadd.s32 %s171, 1
      %p175 = scmp.eq.s32.totalorder %s20, 1
      %p176 = scmp.ne.s32.totalorder %s171, %s173
      %p177 = scmp.eq.s32.totalorder %s20, 0
      %p178 = por %p176, %p177
      %p179 = scmp.ne.s32.totalorder %s171, %s173
      %p180 = scmp.eq.s32.totalorder %s25, 1
      %p181 = por %p179, %p180
      %p182 = scmp.ne.s32.totalorder %s173, %s174
      %p183 = scmp.eq.s32.totalorder %s25, 0
      %p184 = por %p182, %p183
      %p185 = scmp.ne.s32.totalorder %s173, %s174
      %p186 = scmp.eq.s32.totalorder %s26, 1
      %p187 = por %p185, %p186
      %p189 = scmp.ne.s32.totalorder %s174, %s188
      %p190 = scmp.eq.s32.totalorder %s26, 0
      %p191 = por %p189, %p190
      %s192 = ssub.s32 %s27, %s39
      %p193 = scmp.eq.s32.totalorder %s192, 0
      %s195 = sadd.s32 %s194, 1
      %s196 = scalar_select %p193, %s194, %s195
      %p199 = pneg %p193
      %p200 = scmp.eq.s32.totalorder %s20, 1
      %p201 = por %p199, %p200
      %p202 = scmp.ne.s32.totalorder %s194, %s197
      %p203 = scmp.eq.s32.totalorder %s20, 0
      %p204 = por %p202, %p203
      %p205 = scmp.ne.s32.totalorder %s194, %s197
      %p206 = scmp.eq.s32.totalorder %s25, 1
      %p207 = por %p205, %p206
      %p208 = scmp.ne.s32.totalorder %s197, %s198
      %p209 = scmp.eq.s32.totalorder %s25, 0
      %p210 = por %p208, %p209
      %p211 = scmp.ne.s32.totalorder %s197, %s198
      %p212 = scmp.eq.s32.totalorder %s26, 1
      %p213 = por %p211, %p212
      %p215 = scmp.ne.s32.totalorder %s198, %s214
      %p216 = scmp.eq.s32.totalorder %s26, 0
      %p217 = por %p215, %p216
      %s218 = ssub.s32 %s27, %s39
      %p219 = scmp.eq.s32.totalorder %s218, 0
      %s221 = sadd.s32 %s220, 1
      %s222 = scalar_select %p219, %s220, %s221
      %p225 = pneg %p219
      %p226 = scmp.eq.s32.totalorder %s20, 1
      %p227 = por %p225, %p226
      %p228 = scmp.ne.s32.totalorder %s220, %s223
      %p229 = scmp.eq.s32.totalorder %s20, 0
      %p230 = por %p228, %p229
      %p231 = scmp.ne.s32.totalorder %s220, %s223
      %p232 = scmp.eq.s32.totalorder %s25, 1
      %p233 = por %p231, %p232
      %p234 = scmp.ne.s32.totalorder %s223, %s224
      %p235 = scmp.eq.s32.totalorder %s25, 0
      %p236 = por %p234, %p235
      %p237 = scmp.ne.s32.totalorder %s223, %s224
      %p238 = scmp.eq.s32.totalorder %s26, 1
      %p239 = por %p237, %p238
      %p241 = scmp.ne.s32.totalorder %s224, %s240
      %p242 = scmp.eq.s32.totalorder %s26, 0
      %p243 = por %p241, %p242
      %p244 = scmp.le.s32.totalorder 1, %s20
      %p245 = scmp.lt.s32.totalorder %s20, 3
      %p246 = pnand %p244, %p245
      %p247 = pneg %p246
      // Predicated region
      $region9: #{tpu_custom_call.1} parent=5 // pred_check
        _
      $region10: #{tpu_custom_call.1} parent=5 // pred_check_branch
        %249 = sbr.rel (%p246) target = $region12
      $region11: #{tpu_custom_call.1} parent=5 // pred_region
        %s250 = ssub.s32 %s20, 1
        // Predicated region
        $region13: #{tpu_custom_call.1} parent=11 // pred_check
          %p251 = pneg %p58
        $region14: #{tpu_custom_call.1} parent=11 // pred_check_branch
          %253 = sbr.rel (%p251) target = $region16
        $region15: #{tpu_custom_call.1} parent=11 // pred_region
          %s254 = smul.u32 16, %s29
          %s256 = ssub.s32 2048, 2048
          %257 = vsyncadd [#allocation4], %s256
          %s258 = smul.addr %s254, 128
          %s259 = scalar_lea.hbm %s0, %s258
          %s260 = sshll.u32 [#allocation3], 4
          %s261 = int_to_ptr.vmem [resolvable:$true] %s260
          %266 = dma.hbm_to_vmem [thread:$0]  %s259, 2048, %s261, [#allocation4], 128, 128, 8
        $region16: #{tpu_custom_call.1} parent=11 // pred_fallthru
          _
        // Predicated region
        $region17: #{tpu_custom_call.1} parent=11 // pred_check
          %p267 = pneg %p79
        $region18: #{tpu_custom_call.1} parent=11 // pred_check_branch
          %269 = sbr.rel (%p267) target = $region20
        $region19: #{tpu_custom_call.1} parent=11 // pred_region
          %s271 = ssub.s32 2048, 2048
          %272 = vsyncadd [#allocation7], %s271
          %s273 = sshll.u32 [#allocation6], 4
          %s274 = int_to_ptr.vmem [resolvable:$true] %s273
          %279 = dma.hbm_to_vmem [thread:$0]  %s1, 2048, %s274, [#allocation7], 128, 128, 8
        $region20: #{tpu_custom_call.1} parent=11 // pred_fallthru
          _
        // Predicated region
        $region21: #{tpu_custom_call.1} parent=11 // pred_check
          %p280 = pneg %p100
        $region22: #{tpu_custom_call.1} parent=11 // pred_check_branch
          %282 = sbr.rel (%p280) target = $region24
        $region23: #{tpu_custom_call.1} parent=11 // pred_region
          _
        $region24: #{tpu_custom_call.1} parent=11 // pred_fallthru
          _
        // Predicated region
        $region25: #{tpu_custom_call.1} parent=11 // pred_check
          %p283 = pneg %p121
        $region26: #{tpu_custom_call.1} parent=11 // pred_check_branch
          %285 = sbr.rel (%p283) target = $region28
        $region27: #{tpu_custom_call.1} parent=11 // pred_region
          %s287 = ssub.s32 24576, 24576
          %288 = vsyncadd [#allocation7], %s287
          %s289 = sshll.u32 [#allocation8], 4
          %s290 = int_to_ptr.vmem [resolvable:$true] %s289
          %295 = dma.hbm_to_vmem [thread:$0]  %s3, 24576, %s290, [#allocation7], 256, 256, 16
        $region28: #{tpu_custom_call.1} parent=11 // pred_fallthru
          _
        // Predicated region
        $region29: #{tpu_custom_call.1} parent=11 // pred_check
          %p296 = pneg %p142
        $region30: #{tpu_custom_call.1} parent=11 // pred_check_branch
          %298 = sbr.rel (%p296) target = $region32
        $region31: #{tpu_custom_call.1} parent=11 // pred_region
          _
        $region32: #{tpu_custom_call.1} parent=11 // pred_fallthru
          _
        // Predicated region
        $region33: #{tpu_custom_call.1} parent=11 // pred_check
          %p299 = pneg %p163
        $region34: #{tpu_custom_call.1} parent=11 // pred_check_branch
          %301 = sbr.rel (%p299) target = $region36
        $region35: #{tpu_custom_call.1} parent=11 // pred_region
          %s303 = ssub.s32 2048, 2048
          %304 = vsyncadd [#allocation10], %s303
          %s305 = sshll.u32 [#allocation9], 4
          %s306 = int_to_ptr.vmem [resolvable:$true] %s305
          %311 = dma.hbm_to_vmem [thread:$0]  %s5, 2048, %s306, [#allocation10], 128, 128, 8
        $region36: #{tpu_custom_call.1} parent=11 // pred_fallthru
          _
        // Predicated region
        $region37: #{tpu_custom_call.1} parent=11 // pred_check
          %p312 = pneg %p184
        $region38: #{tpu_custom_call.1} parent=11 // pred_check_branch
          %314 = sbr.rel (%p312) target = $region40
        $region39: #{tpu_custom_call.1} parent=11 // pred_region
          _
        $region40: #{tpu_custom_call.1} parent=11 // pred_fallthru
          _
      $region12: #{tpu_custom_call.1} parent=5 // pred_fallthru
        _
      %p315 = scmp.lt.s32.totalorder %s20, 2
      // Predicated region
      $region41: #{tpu_custom_call.1} parent=5 // pred_check
        %p316 = pneg %p315
      $region42: #{tpu_custom_call.1} parent=5 // pred_check_branch
        %318 = sbr.rel (%p316) target = $region44
      $region43: #{tpu_custom_call.1} parent=5 // pred_region
        _
      $region44: #{tpu_custom_call.1} parent=5 // pred_fallthru
        _
      %p319 = scmp.le.s32.totalorder 1, %s20
      %p320 = scmp.lt.s32.totalorder %s20, 3
      %p321 = pnand %p319, %p320
      %p322 = pneg %p321
      // Predicated region
      $region45: #{tpu_custom_call.1} parent=5 // pred_check
        _
      $region46: #{tpu_custom_call.1} parent=5 // pred_check_branch
        %324 = sbr.rel (%p321) target = $region48
      $region47: #{tpu_custom_call.1} parent=5 // pred_region
        %s325 = ssub.s32 %s20, 1
        // Predicated region
        $region49: #{tpu_custom_call.1} parent=47 // pred_check
          %p326 = pneg %p58
        $region50: #{tpu_custom_call.1} parent=47 // pred_check_branch
          %328 = sbr.rel (%p326) target = $region52
        $region51: #{tpu_custom_call.1} parent=47 // pred_region
          %329 = dma.done [#allocation4], 2048
        $region52: #{tpu_custom_call.1} parent=47 // pred_fallthru
          _
        // Predicated region
        $region53: #{tpu_custom_call.1} parent=47 // pred_check
          %p330 = pneg %p79
        $region54: #{tpu_custom_call.1} parent=47 // pred_check_branch
          %332 = sbr.rel (%p330) target = $region56
        $region55: #{tpu_custom_call.1} parent=47 // pred_region
          %333 = dma.done [#allocation7], 2048
        $region56: #{tpu_custom_call.1} parent=47 // pred_fallthru
          _
        // Predicated region
        $region57: #{tpu_custom_call.1} parent=47 // pred_check
          %p334 = pneg %p121
        $region58: #{tpu_custom_call.1} parent=47 // pred_check_branch
          %336 = sbr.rel (%p334) target = $region60
        $region59: #{tpu_custom_call.1} parent=47 // pred_region
          %337 = dma.done [#allocation7], 24576
        $region60: #{tpu_custom_call.1} parent=47 // pred_fallthru
          _
        // Predicated region
        $region61: #{tpu_custom_call.1} parent=47 // pred_check
          %p338 = pneg %p163
        $region62: #{tpu_custom_call.1} parent=47 // pred_check_branch
          %340 = sbr.rel (%p338) target = $region64
        $region63: #{tpu_custom_call.1} parent=47 // pred_region
          %341 = dma.done [#allocation10], 2048
        $region64: #{tpu_custom_call.1} parent=47 // pred_fallthru
          _
        %p342 = pneg %p58
        %p343 = pneg %p55
        %p344 = pneg %p79
        %p345 = pneg %p76
        %p346 = pneg %p100
        %p347 = pneg %p97
        %p348 = pneg %p121
        %p349 = pneg %p118
        %p350 = pneg %p142
        %p351 = pneg %p139
        %p352 = pneg %p163
        %p353 = pneg %p160
        %p354 = pneg %p184
        %p355 = pneg %p181
        %p356 = pneg %p210
        %p357 = pneg %p207
        %p358 = pneg %p236
        %p359 = pneg %p233
        %s360 = smul.u32 16, %s29
        %s361 = smul.u32 16, %s29
        %s362 = smul.u32 16, %s29
        %p363 = scmp.eq.s32.totalorder %s30, 0
        // Predicated region
        $region65: #{tpu_custom_call.1} parent=47 // pred_check
          %p364 = pneg %p363
        $region66: #{tpu_custom_call.1} parent=47 // pred_check_branch
          %366 = sbr.rel (%p364) target = $region68
        $region67: #{tpu_custom_call.1} parent=47 // pred_region
          %367 = vst [vmem:[#allocation2] sm:$0xff] 0.0
          %368 = vst [vmem:[#allocation2 + $0x18] sm:$0xff] 0.0
          %369 = vst [vmem:[#allocation2 + $0x30] sm:$0xff] 0.0
          %370 = vst [vmem:[#allocation2 + $0x48] sm:$0xff] 0.0
          %371 = vst [vmem:[#allocation2 + $0x60] sm:$0xff] 0.0
          %372 = vst [vmem:[#allocation2 + $0x78] sm:$0xff] 0.0
          %373 = vst [vmem:[#allocation2 + $0x90] sm:$0xff] 0.0
          %374 = vst [vmem:[#allocation2 + $0xa8] sm:$0xff] 0.0
          %375 = vst [vmem:[#allocation2 + $0xc0] sm:$0xff] 0.0
          %376 = vst [vmem:[#allocation2 + $0xd8] sm:$0xff] 0.0
          %377 = vst [vmem:[#allocation2 + $0xf0] sm:$0xff] 0.0
          %378 = vst [vmem:[#allocation2 + $0x108] sm:$0xff] 0.0
          %379 = vst [vmem:[#allocation2 + $0x120] sm:$0xff] 0.0
          %380 = vst [vmem:[#allocation2 + $0x138] sm:$0xff] 0.0
          %381 = vst [vmem:[#allocation2 + $0x150] sm:$0xff] 0.0
          %382 = vst [vmem:[#allocation2 + $0x168] sm:$0xff] 0.0
          %383 = vst [vmem:[#allocation2 + $0x10] sm:$0xff] 0.0
          %384 = vst [vmem:[#allocation2 + $0x28] sm:$0xff] 0.0
          %385 = vst [vmem:[#allocation2 + $0x40] sm:$0xff] 0.0
          %386 = vst [vmem:[#allocation2 + $0x58] sm:$0xff] 0.0
          %387 = vst [vmem:[#allocation2 + $0x70] sm:$0xff] 0.0
          %388 = vst [vmem:[#allocation2 + $0x88] sm:$0xff] 0.0
          %389 = vst [vmem:[#allocation2 + $0xa0] sm:$0xff] 0.0
          %390 = vst [vmem:[#allocation2 + $0xb8] sm:$0xff] 0.0
          %391 = vst [vmem:[#allocation2 + $0xd0] sm:$0xff] 0.0
          %392 = vst [vmem:[#allocation2 + $0xe8] sm:$0xff] 0.0
          %393 = vst [vmem:[#allocation2 + $0x100] sm:$0xff] 0.0
          %394 = vst [vmem:[#allocation2 + $0x118] sm:$0xff] 0.0
          %395 = vst [vmem:[#allocation2 + $0x130] sm:$0xff] 0.0
          %396 = vst [vmem:[#allocation2 + $0x148] sm:$0xff] 0.0
          %397 = vst [vmem:[#allocation2 + $0x160] sm:$0xff] 0.0
          %398 = vst [vmem:[#allocation2 + $0x178] sm:$0xff] 0.0
          %v399 = vld [vmem:[#allocation3] sm:$0xff]
          %v400 = vld [vmem:[#allocation3 + $0x8] sm:$0xff]
          %v401 = vld [vmem:[#allocation3 + $0x10] sm:$0xff]
          %v402 = vld [vmem:[#allocation3 + $0x18] sm:$0xff]
          %v403 = vld [vmem:[#allocation3 + $0x20] sm:$0xff]
          %v404 = vld [vmem:[#allocation3 + $0x28] sm:$0xff]
          %v405 = vld [vmem:[#allocation3 + $0x30] sm:$0xff]
          %v406 = vld [vmem:[#allocation3 + $0x38] sm:$0xff]
          %v407 = vld [vmem:[#allocation3 + $0x40] sm:$0xff]
          %v408 = vld [vmem:[#allocation3 + $0x48] sm:$0xff]
          %v409 = vld [vmem:[#allocation3 + $0x50] sm:$0xff]
          %v410 = vld [vmem:[#allocation3 + $0x58] sm:$0xff]
          %v411 = vld [vmem:[#allocation3 + $0x60] sm:$0xff]
          %v412 = vld [vmem:[#allocation3 + $0x68] sm:$0xff]
          %v413 = vld [vmem:[#allocation3 + $0x70] sm:$0xff]
          %v414 = vld [vmem:[#allocation3 + $0x78] sm:$0xff]
          %v415 = vld [vmem:[#allocation6] sm:$0xff]
          %v416 = vld [vmem:[#allocation6 + $0x8] sm:$0xff]
          %v417 = vld [vmem:[#allocation6 + $0x10] sm:$0xff]
          %v418 = vld [vmem:[#allocation6 + $0x18] sm:$0xff]
          %v419 = vld [vmem:[#allocation6 + $0x20] sm:$0xff]
          %v420 = vld [vmem:[#allocation6 + $0x28] sm:$0xff]
          %v421 = vld [vmem:[#allocation6 + $0x30] sm:$0xff]
          %v422 = vld [vmem:[#allocation6 + $0x38] sm:$0xff]
          %v423 = vld [vmem:[#allocation6 + $0x40] sm:$0xff]
          %v424 = vld [vmem:[#allocation6 + $0x48] sm:$0xff]
          %v425 = vld [vmem:[#allocation6 + $0x50] sm:$0xff]
          %v426 = vld [vmem:[#allocation6 + $0x58] sm:$0xff]
          %v427 = vld [vmem:[#allocation6 + $0x60] sm:$0xff]
          %v428 = vld [vmem:[#allocation6 + $0x68] sm:$0xff]
          %v429 = vld [vmem:[#allocation6 + $0x70] sm:$0xff]
          %v430 = vld [vmem:[#allocation6 + $0x78] sm:$0xff]
          %v431 = vld [vmem:[%s2] sm:$0x1]
          %v433 = vlaneseq
          %v434 = vshrl.u32 %v433, 7
          %v435 = vsub.s32 0, %v434
          %v436 = vrot.slane %v431, %v435
          %438 = vmatprep.subr.mxu0 0.0
          %439 = vmatpush1.msra.mxu0 %v415
          %440 = vmatprep.subr.mxu0 0.0
          %441 = vmatpush1.msra.mxu0 %v416
          %442 = vmatprep.subr.mxu0 0.0
          %443 = vmatpush1.msra.mxu0 %v417
          %444 = vmatprep.subr.mxu0 0.0
          %445 = vmatpush1.msra.mxu0 %v418
          %446 = vmatprep.subr.mxu0 0.0
          %447 = vmatpush1.msra.mxu0 %v419
          %448 = vmatprep.subr.mxu0 0.0
          %449 = vmatpush1.msra.mxu0 %v420
          %450 = vmatprep.subr.mxu0 0.0
          %451 = vmatpush1.msra.mxu0 %v421
          %452 = vmatprep.subr.mxu0 0.0
          %453 = vmatpush1.msra.mxu0 %v422
          %454 = vmatprep.subr.mxu0 0.0
          %455 = vmatpush1.msra.mxu0 %v423
          %456 = vmatprep.subr.mxu0 0.0
          %457 = vmatpush1.msra.mxu0 %v424
          %458 = vmatprep.subr.mxu0 0.0
          %459 = vmatpush1.msra.mxu0 %v425
          %460 = vmatprep.subr.mxu0 0.0
          %461 = vmatpush1.msra.mxu0 %v426
          %462 = vmatprep.subr.mxu0 0.0
          %463 = vmatpush1.msra.mxu0 %v427
          %464 = vmatprep.subr.mxu0 0.0
          %465 = vmatpush1.msra.mxu0 %v428
          %466 = vmatprep.subr.mxu0 0.0
          %467 = vmatpush1.msra.mxu0 %v429
          %468 = vmatprep.subr.mxu0 0.0
          %469 = vmatpush1.msra.mxu0 %v430
          %470 = vmatprep.subr.mxu0 0.0
          %471 = vmatpush1.msra.mxu0 0.0
          %472 = vmatprep.subr.mxu0 0.0
          %473 = vmatpush1.msra.mxu0 0.0
          %474 = vmatprep.subr.mxu0 0.0
          %475 = vmatpush1.msra.mxu0 0.0
          %476 = vmatprep.subr.mxu0 0.0
          %477 = vmatpush1.msra.mxu0 0.0
          %478 = vmatprep.subr.mxu0 0.0
          %479 = vmatpush1.msra.mxu0 0.0
          %480 = vmatprep.subr.mxu0 0.0
          %481 = vmatpush1.msra.mxu0 0.0
          %482 = vmatprep.subr.mxu0 0.0
          %483 = vmatpush1.msra.mxu0 0.0
          %484 = vmatprep.subr.mxu0 0.0
          %485 = vmatpush1.msra.mxu0 0.0
          %486 = vmatprep.subr.mxu0 0.0
          %487 = vmatpush1.msra.mxu0 0.0
          %488 = vmatprep.subr.mxu0 0.0
          %489 = vmatpush1.msra.mxu0 0.0
          %490 = vmatprep.subr.mxu0 0.0
          %491 = vmatpush1.msra.mxu0 0.0
          %492 = vmatprep.subr.mxu0 0.0
          %493 = vmatpush1.msra.mxu0 0.0
          %494 = vmatprep.subr.mxu0 0.0
          %495 = vmatpush1.msra.mxu0 0.0
          %496 = vmatprep.subr.mxu0 0.0
          %497 = vmatpush1.msra.mxu0 0.0
          %498 = vmatprep.subr.mxu0 0.0
          %499 = vmatpush1.msra.mxu0 0.0
          %500 = vmatprep.subr.mxu0 0.0
          %501 = vmatpush1.msra.mxu0 0.0
          %502 = vmatprep.mubr.f32.mxu0 0.0
          %503 = vmatmul.mubr.f32.gmra.mrb[0].mxu0 %v399
          %v504 = vpop.f32.mrb[0].mxu0
          %v505 = vadd.f32 %v436, %v504
          %v506 = vpop.f32.mrb[0].mxu0
          %507 = vmatprep.mubr.f32.mxu0 0.0
          %508 = vmatmul.mubr.f32.gmra.mrb[0].mxu0 %v400
          %v509 = vpop.f32.mrb[0].mxu0
          %v510 = vadd.f32 %v436, %v509
          %v511 = vpop.f32.mrb[0].mxu0
          %512 = vmatprep.mubr.f32.mxu0 0.0
          %513 = vmatmul.mubr.f32.gmra.mrb[0].mxu0 %v401
          %v514 = vpop.f32.mrb[0].mxu0
          %v515 = vadd.f32 %v436, %v514
          %v516 = vpop.f32.mrb[0].mxu0
          %517 = vmatprep.mubr.f32.mxu0 0.0
          %518 = vmatmul.mubr.f32.gmra.mrb[0].mxu0 %v402
          %v519 = vpop.f32.mrb[0].mxu0
          %v520 = vadd.f32 %v436, %v519
          %v521 = vpop.f32.mrb[0].mxu0
          %522 = vmatprep.mubr.f32.mxu0 0.0
          %523 = vmatmul.mubr.f32.gmra.mrb[0].mxu0 %v403
          %v524 = vpop.f32.mrb[0].mxu0
          %v525 = vadd.f32 %v436, %v524
          %v526 = vpop.f32.mrb[0].mxu0
          %527 = vmatprep.mubr.f32.mxu0 0.0
          %528 = vmatmul.mubr.f32.gmra.mrb[0].mxu0 %v404
          %v529 = vpop.f32.mrb[0].mxu0
          %v530 = vadd.f32 %v436, %v529
          %v531 = vpop.f32.mrb[0].mxu0
          %532 = vmatprep.mubr.f32.mxu0 0.0
          %533 = vmatmul.mubr.f32.gmra.mrb[0].mxu0 %v405
          %v534 = vpop.f32.mrb[0].mxu0
          %v535 = vadd.f32 %v436, %v534
          %v536 = vpop.f32.mrb[0].mxu0
          %537 = vmatprep.mubr.f32.mxu0 0.0
          %538 = vmatmul.mubr.f32.gmra.mrb[0].mxu0 %v406
          %v539 = vpop.f32.mrb[0].mxu0
          %v540 = vadd.f32 %v436, %v539
          %v541 = vpop.f32.mrb[0].mxu0
          %542 = vmatprep.mubr.f32.mxu0 0.0
          %543 = vmatmul.mubr.f32.gmra.mrb[0].mxu0 %v407
          %v544 = vpop.f32.mrb[0].mxu0
          %v545 = vadd.f32 %v436, %v544
          %v546 = vpop.f32.mrb[0].mxu0
          %547 = vmatprep.mubr.f32.mxu0 0.0
          %548 = vmatmul.mubr.f32.gmra.mrb[0].mxu0 %v408
          %v549 = vpop.f32.mrb[0].mxu0
          %v550 = vadd.f32 %v436, %v549
          %v551 = vpop.f32.mrb[0].mxu0
          %552 = vmatprep.mubr.f32.mxu0 0.0
          %553 = vmatmul.mubr.f32.gmra.mrb[0].mxu0 %v409
          %v554 = vpop.f32.mrb[0].mxu0
          %v555 = vadd.f32 %v436, %v554
          %v556 = vpop.f32.mrb[0].mxu0
          %557 = vmatprep.mubr.f32.mxu0 0.0
          %558 = vmatmul.mubr.f32.gmra.mrb[0].mxu0 %v410
          %v559 = vpop.f32.mrb[0].mxu0
          %v560 = vadd.f32 %v436, %v559
          %v561 = vpop.f32.mrb[0].mxu0
          %562 = vmatprep.mubr.f32.mxu0 0.0
          %563 = vmatmul.mubr.f32.gmra.mrb[0].mxu0 %v411
          %v564 = vpop.f32.mrb[0].mxu0
          %v565 = vadd.f32 %v436, %v564
          %v566 = vpop.f32.mrb[0].mxu0
          %567 = vmatprep.mubr.f32.mxu0 0.0
          %568 = vmatmul.mubr.f32.gmra.mrb[0].mxu0 %v412
          %v569 = vpop.f32.mrb[0].mxu0
          %v570 = vadd.f32 %v436, %v569
          %v571 = vpop.f32.mrb[0].mxu0
          %572 = vmatprep.mubr.f32.mxu0 0.0
          %573 = vmatmul.mubr.f32.gmra.mrb[0].mxu0 %v413
          %v574 = vpop.f32.mrb[0].mxu0
          %v575 = vadd.f32 %v436, %v574
          %v576 = vpop.f32.mrb[0].mxu0
          %577 = vmatprep.mubr.f32.mxu0 0.0
          %578 = vmatmul.mubr.f32.gmra.mrb[0].mxu0 %v414
          %v579 = vpop.f32.mrb[0].mxu0
          %v580 = vadd.f32 %v436, %v579
          %v581 = vpop.f32.mrb[0].mxu0
          %582 = vdwg.mxu0
          %583 = vst [vmem:[#allocation2 + $0x8] sm:$0xff] %v505
          %584 = vst [vmem:[#allocation2 + $0x20] sm:$0xff] %v510
          %585 = vst [vmem:[#allocation2 + $0x38] sm:$0xff] %v515
          %586 = vst [vmem:[#allocation2 + $0x50] sm:$0xff] %v520
          %587 = vst [vmem:[#allocation2 + $0x68] sm:$0xff] %v525
          %588 = vst [vmem:[#allocation2 + $0x80] sm:$0xff] %v530
          %589 = vst [vmem:[#allocation2 + $0x98] sm:$0xff] %v535
          %590 = vst [vmem:[#allocation2 + $0xb0] sm:$0xff] %v540
          %591 = vst [vmem:[#allocation2 + $0xc8] sm:$0xff] %v545
          %592 = vst [vmem:[#allocation2 + $0xe0] sm:$0xff] %v550
          %593 = vst [vmem:[#allocation2 + $0xf8] sm:$0xff] %v555
          %594 = vst [vmem:[#allocation2 + $0x110] sm:$0xff] %v560
          %595 = vst [vmem:[#allocation2 + $0x128] sm:$0xff] %v565
          %596 = vst [vmem:[#allocation2 + $0x140] sm:$0xff] %v570
          %597 = vst [vmem:[#allocation2 + $0x158] sm:$0xff] %v575
          %598 = vst [vmem:[#allocation2 + $0x170] sm:$0xff] %v580
        $region68: #{tpu_custom_call.1} parent=47 // pred_fallthru
          _
        %v599 = vld [vmem:[#allocation2] sm:$0xff]
        %v600 = vld [vmem:[#allocation2 + $0x8] sm:$0xff]
        %v601 = vld [vmem:[#allocation2 + $0x10] sm:$0xff]
        %v602 = vld [vmem:[#allocation2 + $0x18] sm:$0xff]
        %v603 = vld [vmem:[#allocation2 + $0x20] sm:$0xff]
        %v604 = vld [vmem:[#allocation2 + $0x28] sm:$0xff]
        %v605 = vld [vmem:[#allocation2 + $0x30] sm:$0xff]
        %v606 = vld [vmem:[#allocation2 + $0x38] sm:$0xff]
        %v607 = vld [vmem:[#allocation2 + $0x40] sm:$0xff]
        %v608 = vld [vmem:[#allocation2 + $0x48] sm:$0xff]
        %v609 = vld [vmem:[#allocation2 + $0x50] sm:$0xff]
        %v610 = vld [vmem:[#allocation2 + $0x58] sm:$0xff]
        %v611 = vld [vmem:[#allocation2 + $0x60] sm:$0xff]
        %v612 = vld [vmem:[#allocation2 + $0x68] sm:$0xff]
        %v613 = vld [vmem:[#allocation2 + $0x70] sm:$0xff]
        %v614 = vld [vmem:[#allocation2 + $0x78] sm:$0xff]
        %v615 = vld [vmem:[#allocation2 + $0x80] sm:$0xff]
        %v616 = vld [vmem:[#allocation2 + $0x88] sm:$0xff]
        %v617 = vld [vmem:[#allocation2 + $0x90] sm:$0xff]
        %v618 = vld [vmem:[#allocation2 + $0x98] sm:$0xff]
        %v619 = vld [vmem:[#allocation2 + $0xa0] sm:$0xff]
        %v620 = vld [vmem:[#allocation2 + $0xa8] sm:$0xff]
        %v621 = vld [vmem:[#allocation2 + $0xb0] sm:$0xff]
        %v622 = vld [vmem:[#allocation2 + $0xb8] sm:$0xff]
        %v623 = vld [vmem:[#allocation2 + $0xc0] sm:$0xff]
        %v624 = vld [vmem:[#allocation2 + $0xc8] sm:$0xff]
        %v625 = vld [vmem:[#allocation2 + $0xd0] sm:$0xff]
        %v626 = vld [vmem:[#allocation2 + $0xd8] sm:$0xff]
        %v627 = vld [vmem:[#allocation2 + $0xe0] sm:$0xff]
        %v628 = vld [vmem:[#allocation2 + $0xe8] sm:$0xff]
        %v629 = vld [vmem:[#allocation2 + $0xf0] sm:$0xff]
        %v630 = vld [vmem:[#allocation2 + $0xf8] sm:$0xff]
        %v631 = vld [vmem:[#allocation2 + $0x100] sm:$0xff]
        %v632 = vld [vmem:[#allocation2 + $0x108] sm:$0xff]
        %v633 = vld [vmem:[#allocation2 + $0x110] sm:$0xff]
        %v634 = vld [vmem:[#allocation2 + $0x118] sm:$0xff]
        %v635 = vld [vmem:[#allocation2 + $0x120] sm:$0xff]
        %v636 = vld [vmem:[#allocation2 + $0x128] sm:$0xff]
        %v637 = vld [vmem:[#allocation2 + $0x130] sm:$0xff]
        %v638 = vld [vmem:[#allocation2 + $0x138] sm:$0xff]
        %v639 = vld [vmem:[#allocation2 + $0x140] sm:$0xff]
        %v640 = vld [vmem:[#allocation2 + $0x148] sm:$0xff]
        %v641 = vld [vmem:[#allocation2 + $0x150] sm:$0xff]
        %v642 = vld [vmem:[#allocation2 + $0x158] sm:$0xff]
        %v643 = vld [vmem:[#allocation2 + $0x160] sm:$0xff]
        %v644 = vld [vmem:[#allocation2 + $0x168] sm:$0xff]
        %v645 = vld [vmem:[#allocation2 + $0x170] sm:$0xff]
        %v646 = vld [vmem:[#allocation2 + $0x178] sm:$0xff]
        %s647 = smul.u32 %s30, 96
        %s648 = smul.addr %s647, 8
        %s649 = scalar_lea.vmem [#allocation8], %s648
        %v650 = vld [vmem:[%s649] sm:$0xff]
        %v651 = vld [vmem:[%s649 + $0x8] sm:$0xff]
        %v652 = vld [vmem:[%s649 + $0x10] sm:$0xff]
        %v653 = vld [vmem:[%s649 + $0x18] sm:$0xff]
        %v654 = vld [vmem:[%s649 + $0x20] sm:$0xff]
        %v655 = vld [vmem:[%s649 + $0x28] sm:$0xff]
        %v656 = vld [vmem:[%s649 + $0x30] sm:$0xff]
        %v657 = vld [vmem:[%s649 + $0x38] sm:$0xff]
        %v658 = vld [vmem:[%s649 + $0x40] sm:$0xff]
        %v659 = vld [vmem:[%s649 + $0x48] sm:$0xff]
        %v660 = vld [vmem:[%s649 + $0x50] sm:$0xff]
        %v661 = vld [vmem:[%s649 + $0x58] sm:$0xff]
        %v662 = vld [vmem:[%s649 + $0x60] sm:$0xff]
        %v663 = vld [vmem:[%s649 + $0x68] sm:$0xff]
        %v664 = vld [vmem:[%s649 + $0x70] sm:$0xff]
        %v665 = vld [vmem:[%s649 + $0x78] sm:$0xff]
        %v666 = vld [vmem:[%s649 + $0x80] sm:$0xff]
        %v667 = vld [vmem:[%s649 + $0x88] sm:$0xff]
        %v668 = vld [vmem:[%s649 + $0x90] sm:$0xff]
        %v669 = vld [vmem:[%s649 + $0x98] sm:$0xff]
        %v670 = vld [vmem:[%s649 + $0xa0] sm:$0xff]
        %v671 = vld [vmem:[%s649 + $0xa8] sm:$0xff]
        %v672 = vld [vmem:[%s649 + $0xb0] sm:$0xff]
        %v673 = vld [vmem:[%s649 + $0xb8] sm:$0xff]
        %v674 = vld [vmem:[%s649 + $0xc0] sm:$0xff]
        %v675 = vld [vmem:[%s649 + $0xc8] sm:$0xff]
        %v676 = vld [vmem:[%s649 + $0xd0] sm:$0xff]
        %v677 = vld [vmem:[%s649 + $0xd8] sm:$0xff]
        %v678 = vld [vmem:[%s649 + $0xe0] sm:$0xff]
        %v679 = vld [vmem:[%s649 + $0xe8] sm:$0xff]
        %v680 = vld [vmem:[%s649 + $0xf0] sm:$0xff]
        %v681 = vld [vmem:[%s649 + $0xf8] sm:$0xff]
        %v682 = vld [vmem:[%s649 + $0x100] sm:$0xff]
        %v683 = vld [vmem:[%s649 + $0x108] sm:$0xff]
        %v684 = vld [vmem:[%s649 + $0x110] sm:$0xff]
        %v685 = vld [vmem:[%s649 + $0x118] sm:$0xff]
        %v686 = vld [vmem:[%s649 + $0x120] sm:$0xff]
        %v687 = vld [vmem:[%s649 + $0x128] sm:$0xff]
        %v688 = vld [vmem:[%s649 + $0x130] sm:$0xff]
        %v689 = vld [vmem:[%s649 + $0x138] sm:$0xff]
        %v690 = vld [vmem:[%s649 + $0x140] sm:$0xff]
        %v691 = vld [vmem:[%s649 + $0x148] sm:$0xff]
        %v692 = vld [vmem:[%s649 + $0x150] sm:$0xff]
        %v693 = vld [vmem:[%s649 + $0x158] sm:$0xff]
        %v694 = vld [vmem:[%s649 + $0x160] sm:$0xff]
        %v695 = vld [vmem:[%s649 + $0x168] sm:$0xff]
        %v696 = vld [vmem:[%s649 + $0x170] sm:$0xff]
        %v697 = vld [vmem:[%s649 + $0x178] sm:$0xff]
        %v698 = vld [vmem:[%s649 + $0x180] sm:$0xff]
        %v699 = vld [vmem:[%s649 + $0x188] sm:$0xff]
        %v700 = vld [vmem:[%s649 + $0x190] sm:$0xff]
        %v701 = vld [vmem:[%s649 + $0x198] sm:$0xff]
        %v702 = vld [vmem:[%s649 + $0x1a0] sm:$0xff]
        %v703 = vld [vmem:[%s649 + $0x1a8] sm:$0xff]
        %v704 = vld [vmem:[%s649 + $0x1b0] sm:$0xff]
        %v705 = vld [vmem:[%s649 + $0x1b8] sm:$0xff]
        %v706 = vld [vmem:[%s649 + $0x1c0] sm:$0xff]
        %v707 = vld [vmem:[%s649 + $0x1c8] sm:$0xff]
        %v708 = vld [vmem:[%s649 + $0x1d0] sm:$0xff]
        %v709 = vld [vmem:[%s649 + $0x1d8] sm:$0xff]
        %v710 = vld [vmem:[%s649 + $0x1e0] sm:$0xff]
        %v711 = vld [vmem:[%s649 + $0x1e8] sm:$0xff]
        %v712 = vld [vmem:[%s649 + $0x1f0] sm:$0xff]
        %v713 = vld [vmem:[%s649 + $0x1f8] sm:$0xff]
        %v714 = vld [vmem:[%s649 + $0x200] sm:$0xff]
        %v715 = vld [vmem:[%s649 + $0x208] sm:$0xff]
        %v716 = vld [vmem:[%s649 + $0x210] sm:$0xff]
        %v717 = vld [vmem:[%s649 + $0x218] sm:$0xff]
        %v718 = vld [vmem:[%s649 + $0x220] sm:$0xff]
        %v719 = vld [vmem:[%s649 + $0x228] sm:$0xff]
        %v720 = vld [vmem:[%s649 + $0x230] sm:$0xff]
        %v721 = vld [vmem:[%s649 + $0x238] sm:$0xff]
        %v722 = vld [vmem:[%s649 + $0x240] sm:$0xff]
        %v723 = vld [vmem:[%s649 + $0x248] sm:$0xff]
        %v724 = vld [vmem:[%s649 + $0x250] sm:$0xff]
        %v725 = vld [vmem:[%s649 + $0x258] sm:$0xff]
        %v726 = vld [vmem:[%s649 + $0x260] sm:$0xff]
        %v727 = vld [vmem:[%s649 + $0x268] sm:$0xff]
        %v728 = vld [vmem:[%s649 + $0x270] sm:$0xff]
        %v729 = vld [vmem:[%s649 + $0x278] sm:$0xff]
        %v730 = vld [vmem:[%s649 + $0x280] sm:$0xff]
        %v731 = vld [vmem:[%s649 + $0x288] sm:$0xff]
        %v732 = vld [vmem:[%s649 + $0x290] sm:$0xff]
        %v733 = vld [vmem:[%s649 + $0x298] sm:$0xff]
        %v734 = vld [vmem:[%s649 + $0x2a0] sm:$0xff]
        %v735 = vld [vmem:[%s649 + $0x2a8] sm:$0xff]
        %v736 = vld [vmem:[%s649 + $0x2b0] sm:$0xff]
        %v737 = vld [vmem:[%s649 + $0x2b8] sm:$0xff]
        %v738 = vld [vmem:[%s649 + $0x2c0] sm:$0xff]
        %v739 = vld [vmem:[%s649 + $0x2c8] sm:$0xff]
        %v740 = vld [vmem:[%s649 + $0x2d0] sm:$0xff]
        %v741 = vld [vmem:[%s649 + $0x2d8] sm:$0xff]
        %v742 = vld [vmem:[%s649 + $0x2e0] sm:$0xff]
        %v743 = vld [vmem:[%s649 + $0x2e8] sm:$0xff]
        %v744 = vld [vmem:[%s649 + $0x2f0] sm:$0xff]
        %v745 = vld [vmem:[%s649 + $0x2f8] sm:$0xff]
        %s746 = smul.u32 %s30, 2
        %s747 = scalar_lea.vmem %s4, %s746
        %v748 = vld [vmem:[%s747] sm:$0x3]
        %v765 = vrot.slane %v600, 1
        %v766 = vrot.slane %v603, 1
        %v767 = vrot.slane %v606, 1
        %v768 = vrot.slane %v609, 1
        %v769 = vrot.slane %v612, 1
        %v770 = vrot.slane %v615, 1
        %v771 = vrot.slane %v618, 1
        %v772 = vrot.slane %v621, 1
        %v773 = vrot.slane %v624, 1
        %v774 = vrot.slane %v627, 1
        %v775 = vrot.slane %v630, 1
        %v776 = vrot.slane %v633, 1
        %v777 = vrot.slane %v636, 1
        %v778 = vrot.slane %v639, 1
        %v779 = vrot.slane %v642, 1
        %v780 = vrot.slane %v645, 1
        %vm797 = vcmask 1045504
        %v798 = vrot.slane %v600, 2
        %v799 = vrot.slane %v601, 2
        %v800 = vsel %vm797, %v798, %v799
        %v801 = vrot.slane %v603, 2
        %v802 = vrot.slane %v604, 2
        %v803 = vsel %vm797, %v801, %v802
        %v804 = vrot.slane %v606, 2
        %v805 = vrot.slane %v607, 2
        %v806 = vsel %vm797, %v804, %v805
        %v807 = vrot.slane %v609, 2
        %v808 = vrot.slane %v610, 2
        %v809 = vsel %vm797, %v807, %v808
        %v810 = vrot.slane %v612, 2
        %v811 = vrot.slane %v613, 2
        %v812 = vsel %vm797, %v810, %v811
        %v813 = vrot.slane %v615, 2
        %v814 = vrot.slane %v616, 2
        %v815 = vsel %vm797, %v813, %v814
        %v816 = vrot.slane %v618, 2
        %v817 = vrot.slane %v619, 2
        %v818 = vsel %vm797, %v816, %v817
        %v819 = vrot.slane %v621, 2
        %v820 = vrot.slane %v622, 2
        %v821 = vsel %vm797, %v819, %v820
        %v822 = vrot.slane %v624, 2
        %v823 = vrot.slane %v625, 2
        %v824 = vsel %vm797, %v822, %v823
        %v825 = vrot.slane %v627, 2
        %v826 = vrot.slane %v628, 2
        %v827 = vsel %vm797, %v825, %v826
        %v828 = vrot.slane %v630, 2
        %v829 = vrot.slane %v631, 2
        %v830 = vsel %vm797, %v828, %v829
        %v831 = vrot.slane %v633, 2
        %v832 = vrot.slane %v634, 2
        %v833 = vsel %vm797, %v831, %v832
        %v834 = vrot.slane %v636, 2
        %v835 = vrot.slane %v637, 2
        %v836 = vsel %vm797, %v834, %v835
        %v837 = vrot.slane %v639, 2
        %v838 = vrot.slane %v640, 2
        %v839 = vsel %vm797, %v837, %v838
        %v840 = vrot.slane %v642, 2
        %v841 = vrot.slane %v643, 2
        %v842 = vsel %vm797, %v840, %v841
        %v843 = vrot.slane %v645, 2
        %v844 = vrot.slane %v646, 2
        %v845 = vsel %vm797, %v843, %v844
        %vm862 = vcmask 1040384
        %v863 = vrot.slane %v599, 7
        %v864 = vrot.slane %v600, 7
        %v865 = vsel %vm862, %v863, %v864
        %v866 = vrot.slane %v765, 7
        %v867 = vsel %vm862, %v866, %v866
        %v868 = vrot.slane %v798, 7
        %v869 = vrot.slane %v800, 7
        %v870 = vsel %vm862, %v868, %v869
        %v871 = vrot.slane %v602, 7
        %v872 = vrot.slane %v603, 7
        %v873 = vsel %vm862, %v871, %v872
        %v874 = vrot.slane %v766, 7
        %v875 = vsel %vm862, %v874, %v874
        %v876 = vrot.slane %v801, 7
        %v877 = vrot.slane %v803, 7
        %v878 = vsel %vm862, %v876, %v877
        %v879 = vrot.slane %v605, 7
        %v880 = vrot.slane %v606, 7
        %v881 = vsel %vm862, %v879, %v880
        %v882 = vrot.slane %v767, 7
        %v883 = vsel %vm862, %v882, %v882
        %v884 = vrot.slane %v804, 7
        %v885 = vrot.slane %v806, 7
        %v886 = vsel %vm862, %v884, %v885
        %v887 = vrot.slane %v608, 7
        %v888 = vrot.slane %v609, 7
        %v889 = vsel %vm862, %v887, %v888
        %v890 = vrot.slane %v768, 7
        %v891 = vsel %vm862, %v890, %v890
        %v892 = vrot.slane %v807, 7
        %v893 = vrot.slane %v809, 7
        %v894 = vsel %vm862, %v892, %v893
        %v895 = vrot.slane %v611, 7
        %v896 = vrot.slane %v612, 7
        %v897 = vsel %vm862, %v895, %v896
        %v898 = vrot.slane %v769, 7
        %v899 = vsel %vm862, %v898, %v898
        %v900 = vrot.slane %v810, 7
        %v901 = vrot.slane %v812, 7
        %v902 = vsel %vm862, %v900, %v901
        %v903 = vrot.slane %v614, 7
        %v904 = vrot.slane %v615, 7
        %v905 = vsel %vm862, %v903, %v904
        %v906 = vrot.slane %v770, 7
        %v907 = vsel %vm862, %v906, %v906
        %v908 = vrot.slane %v813, 7
        %v909 = vrot.slane %v815, 7
        %v910 = vsel %vm862, %v908, %v909
        %v911 = vrot.slane %v617, 7
        %v912 = vrot.slane %v618, 7
        %v913 = vsel %vm862, %v911, %v912
        %v914 = vrot.slane %v771, 7
        %v915 = vsel %vm862, %v914, %v914
        %v916 = vrot.slane %v816, 7
        %v917 = vrot.slane %v818, 7
        %v918 = vsel %vm862, %v916, %v917
        %v919 = vrot.slane %v620, 7
        %v920 = vrot.slane %v621, 7
        %v921 = vsel %vm862, %v919, %v920
        %v922 = vrot.slane %v772, 7
        %v923 = vsel %vm862, %v922, %v922
        %v924 = vrot.slane %v819, 7
        %v925 = vrot.slane %v821, 7
        %v926 = vsel %vm862, %v924, %v925
        %v927 = vrot.slane %v623, 7
        %v928 = vrot.slane %v624, 7
        %v929 = vsel %vm862, %v927, %v928
        %v930 = vrot.slane %v773, 7
        %v931 = vsel %vm862, %v930, %v930
        %v932 = vrot.slane %v822, 7
        %v933 = vrot.slane %v824, 7
        %v934 = vsel %vm862, %v932, %v933
        %v935 = vrot.slane %v626, 7
        %v936 = vrot.slane %v627, 7
        %v937 = vsel %vm862, %v935, %v936
        %v938 = vrot.slane %v774, 7
        %v939 = vsel %vm862, %v938, %v938
        %v940 = vrot.slane %v825, 7
        %v941 = vrot.slane %v827, 7
        %v942 = vsel %vm862, %v940, %v941
        %v943 = vrot.slane %v629, 7
        %v944 = vrot.slane %v630, 7
        %v945 = vsel %vm862, %v943, %v944
        %v946 = vrot.slane %v775, 7
        %v947 = vsel %vm862, %v946, %v946
        %v948 = vrot.slane %v828, 7
        %v949 = vrot.slane %v830, 7
        %v950 = vsel %vm862, %v948, %v949
        %v951 = vrot.slane %v632, 7
        %v952 = vrot.slane %v633, 7
        %v953 = vsel %vm862, %v951, %v952
        %v954 = vrot.slane %v776, 7
        %v955 = vsel %vm862, %v954, %v954
        %v956 = vrot.slane %v831, 7
        %v957 = vrot.slane %v833, 7
        %v958 = vsel %vm862, %v956, %v957
        %v959 = vrot.slane %v635, 7
        %v960 = vrot.slane %v636, 7
        %v961 = vsel %vm862, %v959, %v960
        %v962 = vrot.slane %v777, 7
        %v963 = vsel %vm862, %v962, %v962
        %v964 = vrot.slane %v834, 7
        %v965 = vrot.slane %v836, 7
        %v966 = vsel %vm862, %v964, %v965
        %v967 = vrot.slane %v638, 7
        %v968 = vrot.slane %v639, 7
        %v969 = vsel %vm862, %v967, %v968
        %v970 = vrot.slane %v778, 7
        %v971 = vsel %vm862, %v970, %v970
        %v972 = vrot.slane %v837, 7
        %v973 = vrot.slane %v839, 7
        %v974 = vsel %vm862, %v972, %v973
        %v975 = vrot.slane %v641, 7
        %v976 = vrot.slane %v642, 7
        %v977 = vsel %vm862, %v975, %v976
        %v978 = vrot.slane %v779, 7
        %v979 = vsel %vm862, %v978, %v978
        %v980 = vrot.slane %v840, 7
        %v981 = vrot.slane %v842, 7
        %v982 = vsel %vm862, %v980, %v981
        %v983 = vrot.slane %v644, 7
        %v984 = vrot.slane %v645, 7
        %v985 = vsel %vm862, %v983, %v984
        %v986 = vrot.slane %v780, 7
        %v987 = vsel %vm862, %v986, %v986
        %v988 = vrot.slane %v843, 7
        %v989 = vrot.slane %v845, 7
        %v990 = vsel %vm862, %v988, %v989
        %v1040 = vlaneseq
        %v1041 = vshrl.u32 %v1040, 7
        %v1042 = vsub.s32 0, %v1041
        %v1043 = vrot.slane %v748, %v1042
        %v1044 = vlaneseq
        %v1045 = vshrl.u32 %v1044, 7
        %v1046 = vsub.s32 1, %v1045
        %v1047 = vrot.slane %v748, %v1046
        %1050 = vmatprep.subr.mxu0 %v651
        %1051 = vmatpush1.msra.mxu0 %v650
        %1052 = vmatprep.subr.mxu0 %v653
        %1053 = vmatpush1.msra.mxu0 %v652
        %1054 = vmatprep.subr.mxu0 %v655
        %1055 = vmatpush1.msra.mxu0 %v654
        %1056 = vmatprep.subr.mxu0 %v657
        %1057 = vmatpush1.msra.mxu0 %v656
        %1058 = vmatprep.subr.mxu0 %v659
        %1059 = vmatpush1.msra.mxu0 %v658
        %1060 = vmatprep.subr.mxu0 %v661
        %1061 = vmatpush1.msra.mxu0 %v660
        %1062 = vmatprep.subr.mxu0 %v663
        %1063 = vmatpush1.msra.mxu0 %v662
        %1064 = vmatprep.subr.mxu0 %v665
        %1065 = vmatpush1.msra.mxu0 %v664
        %1066 = vmatprep.subr.mxu0 %v667
        %1067 = vmatpush1.msra.mxu0 %v666
        %1068 = vmatprep.subr.mxu0 %v669
        %1069 = vmatpush1.msra.mxu0 %v668
        %1070 = vmatprep.subr.mxu0 %v671
        %1071 = vmatpush1.msra.mxu0 %v670
        %1072 = vmatprep.subr.mxu0 %v673
        %1073 = vmatpush1.msra.mxu0 %v672
        %1074 = vmatprep.subr.mxu0 %v675
        %1075 = vmatpush1.msra.mxu0 %v674
        %1076 = vmatprep.subr.mxu0 %v677
        %1077 = vmatpush1.msra.mxu0 %v676
        %1078 = vmatprep.subr.mxu0 %v679
        %1079 = vmatpush1.msra.mxu0 %v678
        %1080 = vmatprep.subr.mxu0 %v681
        %1081 = vmatpush1.msra.mxu0 %v680
        %1082 = vmatprep.subr.mxu0 %v683
        %1083 = vmatpush1.msra.mxu0 %v682
        %1084 = vmatprep.subr.mxu0 %v685
        %1085 = vmatpush1.msra.mxu0 %v684
        %1086 = vmatprep.subr.mxu0 %v687
        %1087 = vmatpush1.msra.mxu0 %v686
        %1088 = vmatprep.subr.mxu0 %v689
        %1089 = vmatpush1.msra.mxu0 %v688
        %1090 = vmatprep.subr.mxu0 %v691
        %1091 = vmatpush1.msra.mxu0 %v690
        %1092 = vmatprep.subr.mxu0 %v693
        %1093 = vmatpush1.msra.mxu0 %v692
        %1094 = vmatprep.subr.mxu0 %v695
        %1095 = vmatpush1.msra.mxu0 %v694
        %1096 = vmatprep.subr.mxu0 %v697
        %1097 = vmatpush1.msra.mxu0 %v696
        %1098 = vmatprep.subr.mxu0 %v699
        %1099 = vmatpush1.msra.mxu0 %v698
        %1100 = vmatprep.subr.mxu0 %v701
        %1101 = vmatpush1.msra.mxu0 %v700
        %1102 = vmatprep.subr.mxu0 %v703
        %1103 = vmatpush1.msra.mxu0 %v702
        %1104 = vmatprep.subr.mxu0 %v705
        %1105 = vmatpush1.msra.mxu0 %v704
        %1106 = vmatprep.subr.mxu0 %v707
        %1107 = vmatpush1.msra.mxu0 %v706
        %1108 = vmatprep.subr.mxu0 %v709
        %1109 = vmatpush1.msra.mxu0 %v708
        %1110 = vmatprep.subr.mxu0 %v711
        %1111 = vmatpush1.msra.mxu0 %v710
        %1112 = vmatprep.subr.mxu0 %v713
        %1113 = vmatpush1.msra.mxu0 %v712
        %1114 = vmatprep.mubr.f32.mxu0 %v867
        %1115 = vmatmul.mubr.f32.gmra.mrb[0].mxu0 %v865
        %v1116 = vpop.f32.mrb[0].mxu0
        %v1117 = vadd.f32 %v1043, %v1116
        %v1118 = vpop.f32.mrb[0].mxu0
        %v1119 = vadd.f32 %v1047, %v1118
        %1120 = vmatprep.mubr.f32.mxu0 %v875
        %1121 = vmatmul.mubr.f32.gmra.mrb[0].mxu0 %v873
        %v1122 = vpop.f32.mrb[0].mxu0
        %v1123 = vadd.f32 %v1043, %v1122
        %v1124 = vpop.f32.mrb[0].mxu0
        %v1125 = vadd.f32 %v1047, %v1124
        %1126 = vmatprep.mubr.f32.mxu0 %v883
        %1127 = vmatmul.mubr.f32.gmra.mrb[0].mxu0 %v881
        %v1128 = vpop.f32.mrb[0].mxu0
        %v1129 = vadd.f32 %v1043, %v1128
        %v1130 = vpop.f32.mrb[0].mxu0
        %v1131 = vadd.f32 %v1047, %v1130
        %1132 = vmatprep.mubr.f32.mxu0 %v891
        %1133 = vmatmul.mubr.f32.gmra.mrb[0].mxu0 %v889
        %v1134 = vpop.f32.mrb[0].mxu0
        %v1135 = vadd.f32 %v1043, %v1134
        %v1136 = vpop.f32.mrb[0].mxu0
        %v1137 = vadd.f32 %v1047, %v1136
        %1138 = vmatprep.mubr.f32.mxu0 %v899
        %1139 = vmatmul.mubr.f32.gmra.mrb[0].mxu0 %v897
        %v1140 = vpop.f32.mrb[0].mxu0
        %v1141 = vadd.f32 %v1043, %v1140
        %v1142 = vpop.f32.mrb[0].mxu0
        %v1143 = vadd.f32 %v1047, %v1142
        %1144 = vmatprep.mubr.f32.mxu0 %v907
        %1145 = vmatmul.mubr.f32.gmra.mrb[0].mxu0 %v905
        %v1146 = vpop.f32.mrb[0].mxu0
        %v1147 = vadd.f32 %v1043, %v1146
        %v1148 = vpop.f32.mrb[0].mxu0
        %v1149 = vadd.f32 %v1047, %v1148
        %1150 = vmatprep.mubr.f32.mxu0 %v915
        %1151 = vmatmul.mubr.f32.gmra.mrb[0].mxu0 %v913
        %v1152 = vpop.f32.mrb[0].mxu0
        %v1153 = vadd.f32 %v1043, %v1152
        %v1154 = vpop.f32.mrb[0].mxu0
        %v1155 = vadd.f32 %v1047, %v1154
        %1156 = vmatprep.mubr.f32.mxu0 %v923
        %1157 = vmatmul.mubr.f32.gmra.mrb[0].mxu0 %v921
        %v1158 = vpop.f32.mrb[0].mxu0
        %v1159 = vadd.f32 %v1043, %v1158
        %v1160 = vpop.f32.mrb[0].mxu0
        %v1161 = vadd.f32 %v1047, %v1160
        %1162 = vmatprep.mubr.f32.mxu0 %v931
        %1163 = vmatmul.mubr.f32.gmra.mrb[0].mxu0 %v929
        %v1164 = vpop.f32.mrb[0].mxu0
        %v1165 = vadd.f32 %v1043, %v1164
        %v1166 = vpop.f32.mrb[0].mxu0
        %v1167 = vadd.f32 %v1047, %v1166
        %1168 = vmatprep.mubr.f32.mxu0 %v939
        %1169 = vmatmul.mubr.f32.gmra.mrb[0].mxu0 %v937
        %v1170 = vpop.f32.mrb[0].mxu0
        %v1171 = vadd.f32 %v1043, %v1170
        %v1172 = vpop.f32.mrb[0].mxu0
        %v1173 = vadd.f32 %v1047, %v1172
        %1174 = vmatprep.mubr.f32.mxu0 %v947
        %1175 = vmatmul.mubr.f32.gmra.mrb[0].mxu0 %v945
        %v1176 = vpop.f32.mrb[0].mxu0
        %v1177 = vadd.f32 %v1043, %v1176
        %v1178 = vpop.f32.mrb[0].mxu0
        %v1179 = vadd.f32 %v1047, %v1178
        %1180 = vmatprep.mubr.f32.mxu0 %v955
        %1181 = vmatmul.mubr.f32.gmra.mrb[0].mxu0 %v953
        %v1182 = vpop.f32.mrb[0].mxu0
        %v1183 = vadd.f32 %v1043, %v1182
        %v1184 = vpop.f32.mrb[0].mxu0
        %v1185 = vadd.f32 %v1047, %v1184
        %1186 = vmatprep.mubr.f32.mxu0 %v963
        %1187 = vmatmul.mubr.f32.gmra.mrb[0].mxu0 %v961
        %v1188 = vpop.f32.mrb[0].mxu0
        %v1189 = vadd.f32 %v1043, %v1188
        %v1190 = vpop.f32.mrb[0].mxu0
        %v1191 = vadd.f32 %v1047, %v1190
        %1192 = vmatprep.mubr.f32.mxu0 %v971
        %1193 = vmatmul.mubr.f32.gmra.mrb[0].mxu0 %v969
        %v1194 = vpop.f32.mrb[0].mxu0
        %v1195 = vadd.f32 %v1043, %v1194
        %v1196 = vpop.f32.mrb[0].mxu0
        %v1197 = vadd.f32 %v1047, %v1196
        %1198 = vmatprep.mubr.f32.mxu0 %v979
        %1199 = vmatmul.mubr.f32.gmra.mrb[0].mxu0 %v977
        %v1200 = vpop.f32.mrb[0].mxu0
        %v1201 = vadd.f32 %v1043, %v1200
        %v1202 = vpop.f32.mrb[0].mxu0
        %v1203 = vadd.f32 %v1047, %v1202
        %1204 = vmatprep.mubr.f32.mxu0 %v987
        %1205 = vmatmul.mubr.f32.gmra.mrb[0].mxu0 %v985
        %v1206 = vpop.f32.mrb[0].mxu0
        %v1207 = vadd.f32 %v1043, %v1206
        %v1208 = vpop.f32.mrb[0].mxu0
        %v1209 = vadd.f32 %v1047, %v1208
        %1210 = vdwg.mxu0
        %1211 = vmatprep.subr.mxu0 %v715
        %1212 = vmatpush1.msra.mxu0 %v714
        %1213 = vmatprep.subr.mxu0 %v717
        %1214 = vmatpush1.msra.mxu0 %v716
        %1215 = vmatprep.subr.mxu0 %v719
        %1216 = vmatpush1.msra.mxu0 %v718
        %1217 = vmatprep.subr.mxu0 %v721
        %1218 = vmatpush1.msra.mxu0 %v720
        %1219 = vmatprep.subr.mxu0 %v723
        %1220 = vmatpush1.msra.mxu0 %v722
        %1221 = vmatprep.subr.mxu0 %v725
        %1222 = vmatpush1.msra.mxu0 %v724
        %1223 = vmatprep.subr.mxu0 %v727
        %1224 = vmatpush1.msra.mxu0 %v726
        %1225 = vmatprep.subr.mxu0 %v729
        %1226 = vmatpush1.msra.mxu0 %v728
        %1227 = vmatprep.subr.mxu0 %v731
        %1228 = vmatpush1.msra.mxu0 %v730
        %1229 = vmatprep.subr.mxu0 %v733
        %1230 = vmatpush1.msra.mxu0 %v732
        %1231 = vmatprep.subr.mxu0 %v735
        %1232 = vmatpush1.msra.mxu0 %v734
        %1233 = vmatprep.subr.mxu0 %v737
        %1234 = vmatpush1.msra.mxu0 %v736
        %1235 = vmatprep.subr.mxu0 %v739
        %1236 = vmatpush1.msra.mxu0 %v738
        %1237 = vmatprep.subr.mxu0 %v741
        %1238 = vmatpush1.msra.mxu0 %v740
        %1239 = vmatprep.subr.mxu0 %v743
        %1240 = vmatpush1.msra.mxu0 %v742
        %1241 = vmatprep.subr.mxu0 %v745
        %1242 = vmatpush1.msra.mxu0 %v744
        %1243 = vmatprep.subr.mxu0 0.0
        %1244 = vmatpush1.msra.mxu0 0.0
        %1245 = vmatprep.subr.mxu0 0.0
        %1246 = vmatpush1.msra.mxu0 0.0
        %1247 = vmatprep.subr.mxu0 0.0
        %1248 = vmatpush1.msra.mxu0 0.0
        %1249 = vmatprep.subr.mxu0 0.0
        %1250 = vmatpush1.msra.mxu0 0.0
        %1251 = vmatprep.subr.mxu0 0.0
        %1252 = vmatpush1.msra.mxu0 0.0
        %1253 = vmatprep.subr.mxu0 0.0
        %1254 = vmatpush1.msra.mxu0 0.0
        %1255 = vmatprep.subr.mxu0 0.0
        %1256 = vmatpush1.msra.mxu0 0.0
        %1257 = vmatprep.subr.mxu0 0.0
        %1258 = vmatpush1.msra.mxu0 0.0
        %1259 = vmatprep.subr.mxu0 0.0
        %1260 = vmatpush1.msra.mxu0 0.0
        %1261 = vmatprep.subr.mxu0 0.0
        %1262 = vmatpush1.msra.mxu0 0.0
        %1263 = vmatprep.subr.mxu0 0.0
        %1264 = vmatpush1.msra.mxu0 0.0
        %1265 = vmatprep.subr.mxu0 0.0
        %1266 = vmatpush1.msra.mxu0 0.0
        %1267 = vmatprep.subr.mxu0 0.0
        %1268 = vmatpush1.msra.mxu0 0.0
        %1269 = vmatprep.subr.mxu0 0.0
        %1270 = vmatpush1.msra.mxu0 0.0
        %1271 = vmatprep.subr.mxu0 0.0
        %1272 = vmatpush1.msra.mxu0 0.0
        %1273 = vmatprep.subr.mxu0 0.0
        %1274 = vmatpush1.msra.mxu0 0.0
        %1275 = vmatprep.mubr.f32.mxu0 0.0
        %1276 = vmatmul.mubr.f32.gmra.mrb[0].mxu0 %v870
        %v1277 = vpop.f32.mrb[0].mxu0
        %v1278 = vadd.f32 %v1117, %v1277
        %v1279 = vpop.f32.mrb[0].mxu0
        %v1280 = vadd.f32 %v1119, %v1279
        %1281 = vmatprep.mubr.f32.mxu0 0.0
        %1282 = vmatmul.mubr.f32.gmra.mrb[0].mxu0 %v878
        %v1283 = vpop.f32.mrb[0].mxu0
        %v1284 = vadd.f32 %v1123, %v1283
        %v1285 = vpop.f32.mrb[0].mxu0
        %v1286 = vadd.f32 %v1125, %v1285
        %1287 = vmatprep.mubr.f32.mxu0 0.0
        %1288 = vmatmul.mubr.f32.gmra.mrb[0].mxu0 %v886
        %v1289 = vpop.f32.mrb[0].mxu0
        %v1290 = vadd.f32 %v1129, %v1289
        %v1291 = vpop.f32.mrb[0].mxu0
        %v1292 = vadd.f32 %v1131, %v1291
        %1293 = vmatprep.mubr.f32.mxu0 0.0
        %1294 = vmatmul.mubr.f32.gmra.mrb[0].mxu0 %v894
        %v1295 = vpop.f32.mrb[0].mxu0
        %v1296 = vadd.f32 %v1135, %v1295
        %v1297 = vpop.f32.mrb[0].mxu0
        %v1298 = vadd.f32 %v1137, %v1297
        %1299 = vmatprep.mubr.f32.mxu0 0.0
        %1300 = vmatmul.mubr.f32.gmra.mrb[0].mxu0 %v902
        %v1301 = vpop.f32.mrb[0].mxu0
        %v1302 = vadd.f32 %v1141, %v1301
        %v1303 = vpop.f32.mrb[0].mxu0
        %v1304 = vadd.f32 %v1143, %v1303
        %1305 = vmatprep.mubr.f32.mxu0 0.0
        %1306 = vmatmul.mubr.f32.gmra.mrb[0].mxu0 %v910
        %v1307 = vpop.f32.mrb[0].mxu0
        %v1308 = vadd.f32 %v1147, %v1307
        %v1309 = vpop.f32.mrb[0].mxu0
        %v1310 = vadd.f32 %v1149, %v1309
        %1311 = vmatprep.mubr.f32.mxu0 0.0
        %1312 = vmatmul.mubr.f32.gmra.mrb[0].mxu0 %v918
        %v1313 = vpop.f32.mrb[0].mxu0
        %v1314 = vadd.f32 %v1153, %v1313
        %v1315 = vpop.f32.mrb[0].mxu0
        %v1316 = vadd.f32 %v1155, %v1315
        %1317 = vmatprep.mubr.f32.mxu0 0.0
        %1318 = vmatmul.mubr.f32.gmra.mrb[0].mxu0 %v926
        %v1319 = vpop.f32.mrb[0].mxu0
        %v1320 = vadd.f32 %v1159, %v1319
        %v1321 = vpop.f32.mrb[0].mxu0
        %v1322 = vadd.f32 %v1161, %v1321
        %1323 = vmatprep.mubr.f32.mxu0 0.0
        %1324 = vmatmul.mubr.f32.gmra.mrb[0].mxu0 %v934
        %v1325 = vpop.f32.mrb[0].mxu0
        %v1326 = vadd.f32 %v1165, %v1325
        %v1327 = vpop.f32.mrb[0].mxu0
        %v1328 = vadd.f32 %v1167, %v1327
        %1329 = vmatprep.mubr.f32.mxu0 0.0
        %1330 = vmatmul.mubr.f32.gmra.mrb[0].mxu0 %v942
        %v1331 = vpop.f32.mrb[0].mxu0
        %v1332 = vadd.f32 %v1171, %v1331
        %v1333 = vpop.f32.mrb[0].mxu0
        %v1334 = vadd.f32 %v1173, %v1333
        %1335 = vmatprep.mubr.f32.mxu0 0.0
        %1336 = vmatmul.mubr.f32.gmra.mrb[0].mxu0 %v950
        %v1337 = vpop.f32.mrb[0].mxu0
        %v1338 = vadd.f32 %v1177, %v1337
        %v1339 = vpop.f32.mrb[0].mxu0
        %v1340 = vadd.f32 %v1179, %v1339
        %1341 = vmatprep.mubr.f32.mxu0 0.0
        %1342 = vmatmul.mubr.f32.gmra.mrb[0].mxu0 %v958
        %v1343 = vpop.f32.mrb[0].mxu0
        %v1344 = vadd.f32 %v1183, %v1343
        %v1345 = vpop.f32.mrb[0].mxu0
        %v1346 = vadd.f32 %v1185, %v1345
        %1347 = vmatprep.mubr.f32.mxu0 0.0
        %1348 = vmatmul.mubr.f32.gmra.mrb[0].mxu0 %v966
        %v1349 = vpop.f32.mrb[0].mxu0
        %v1350 = vadd.f32 %v1189, %v1349
        %v1351 = vpop.f32.mrb[0].mxu0
        %v1352 = vadd.f32 %v1191, %v1351
        %1353 = vmatprep.mubr.f32.mxu0 0.0
        %1354 = vmatmul.mubr.f32.gmra.mrb[0].mxu0 %v974
        %v1355 = vpop.f32.mrb[0].mxu0
        %v1356 = vadd.f32 %v1195, %v1355
        %v1357 = vpop.f32.mrb[0].mxu0
        %v1358 = vadd.f32 %v1197, %v1357
        %1359 = vmatprep.mubr.f32.mxu0 0.0
        %1360 = vmatmul.mubr.f32.gmra.mrb[0].mxu0 %v982
        %v1361 = vpop.f32.mrb[0].mxu0
        %v1362 = vadd.f32 %v1201, %v1361
        %v1363 = vpop.f32.mrb[0].mxu0
        %v1364 = vadd.f32 %v1203, %v1363
        %1365 = vmatprep.mubr.f32.mxu0 0.0
        %1366 = vmatmul.mubr.f32.gmra.mrb[0].mxu0 %v990
        %v1367 = vpop.f32.mrb[0].mxu0
        %v1368 = vadd.f32 %v1207, %v1367
        %v1369 = vpop.f32.mrb[0].mxu0
        %v1370 = vadd.f32 %v1209, %v1369
        %1371 = vdwg.mxu0
        %v1372 = vxor.u32 %v1280, 2147483648
        %v1373 = vxor.u32 %v1286, 2147483648
        %v1374 = vxor.u32 %v1292, 2147483648
        %v1375 = vxor.u32 %v1298, 2147483648
        %v1376 = vxor.u32 %v1304, 2147483648
        %v1377 = vxor.u32 %v1310, 2147483648
        %v1378 = vxor.u32 %v1316, 2147483648
        %v1379 = vxor.u32 %v1322, 2147483648
        %v1380 = vxor.u32 %v1328, 2147483648
        %v1381 = vxor.u32 %v1334, 2147483648
        %v1382 = vxor.u32 %v1340, 2147483648
        %v1383 = vxor.u32 %v1346, 2147483648
        %v1384 = vxor.u32 %v1352, 2147483648
        %v1385 = vxor.u32 %v1358, 2147483648
        %v1386 = vxor.u32 %v1364, 2147483648
        %v1387 = vxor.u32 %v1370, 2147483648
        %v1388 = vmul.f32 %v1372, 1.442695
        %v1389 = vpow.pop %v1388
        %v1390 = vmul.f32 %v1373, 1.442695
        %v1391 = vpow.pop %v1390
        %v1392 = vmul.f32 %v1374, 1.442695
        %v1393 = vpow.pop %v1392
        %v1394 = vmul.f32 %v1375, 1.442695
        %v1395 = vpow.pop %v1394
        %v1396 = vmul.f32 %v1376, 1.442695
        %v1397 = vpow.pop %v1396
        %v1398 = vmul.f32 %v1377, 1.442695
        %v1399 = vpow.pop %v1398
        %v1400 = vmul.f32 %v1378, 1.442695
        %v1401 = vpow.pop %v1400
        %v1402 = vmul.f32 %v1379, 1.442695
        %v1403 = vpow.pop %v1402
        %v1404 = vmul.f32 %v1380, 1.442695
        %v1405 = vpow.pop %v1404
        %v1406 = vmul.f32 %v1381, 1.442695
        %v1407 = vpow.pop %v1406
        %v1408 = vmul.f32 %v1382, 1.442695
        %v1409 = vpow.pop %v1408
        %v1410 = vmul.f32 %v1383, 1.442695
        %v1411 = vpow.pop %v1410
        %v1412 = vmul.f32 %v1384, 1.442695
        %v1413 = vpow.pop %v1412
        %v1414 = vmul.f32 %v1385, 1.442695
        %v1415 = vpow.pop %v1414
        %v1416 = vmul.f32 %v1386, 1.442695
        %v1417 = vpow.pop %v1416
        %v1418 = vmul.f32 %v1387, 1.442695
        %v1419 = vpow.pop %v1418
        %v1420 = vadd.f32 %v1389, 1.0
        %v1421 = vadd.f32 %v1391, 1.0
        %v1422 = vadd.f32 %v1393, 1.0
        %v1423 = vadd.f32 %v1395, 1.0
        %v1424 = vadd.f32 %v1397, 1.0
        %v1425 = vadd.f32 %v1399, 1.0
        %v1426 = vadd.f32 %v1401, 1.0
        %v1427 = vadd.f32 %v1403, 1.0
        %v1428 = vadd.f32 %v1405, 1.0
        %v1429 = vadd.f32 %v1407, 1.0
        %v1430 = vadd.f32 %v1409, 1.0
        %v1431 = vadd.f32 %v1411, 1.0
        %v1432 = vadd.f32 %v1413, 1.0
        %v1433 = vadd.f32 %v1415, 1.0
        %v1434 = vadd.f32 %v1417, 1.0
        %v1435 = vadd.f32 %v1419, 1.0
        %v1436 = vrcp.pop %v1420
        %v1437 = vmul.f32 1.0, %v1436
        %v1438 = vrcp.pop %v1421
        %v1439 = vmul.f32 1.0, %v1438
        %v1440 = vrcp.pop %v1422
        %v1441 = vmul.f32 1.0, %v1440
        %v1442 = vrcp.pop %v1423
        %v1443 = vmul.f32 1.0, %v1442
        %v1444 = vrcp.pop %v1424
        %v1445 = vmul.f32 1.0, %v1444
        %v1446 = vrcp.pop %v1425
        %v1447 = vmul.f32 1.0, %v1446
        %v1448 = vrcp.pop %v1426
        %v1449 = vmul.f32 1.0, %v1448
        %v1450 = vrcp.pop %v1427
        %v1451 = vmul.f32 1.0, %v1450
        %v1452 = vrcp.pop %v1428
        %v1453 = vmul.f32 1.0, %v1452
        %v1454 = vrcp.pop %v1429
        %v1455 = vmul.f32 1.0, %v1454
        %v1456 = vrcp.pop %v1430
        %v1457 = vmul.f32 1.0, %v1456
        %v1458 = vrcp.pop %v1431
        %v1459 = vmul.f32 1.0, %v1458
        %v1460 = vrcp.pop %v1432
        %v1461 = vmul.f32 1.0, %v1460
        %v1462 = vrcp.pop %v1433
        %v1463 = vmul.f32 1.0, %v1462
        %v1464 = vrcp.pop %v1434
        %v1465 = vmul.f32 1.0, %v1464
        %v1466 = vrcp.pop %v1435
        %v1467 = vmul.f32 1.0, %v1466
        %v1468 = vmul.f32 %v1278, %v1437
        %v1469 = vmul.f32 %v1284, %v1439
        %v1470 = vmul.f32 %v1290, %v1441
        %v1471 = vmul.f32 %v1296, %v1443
        %v1472 = vmul.f32 %v1302, %v1445
        %v1473 = vmul.f32 %v1308, %v1447
        %v1474 = vmul.f32 %v1314, %v1449
        %v1475 = vmul.f32 %v1320, %v1451
        %v1476 = vmul.f32 %v1326, %v1453
        %v1477 = vmul.f32 %v1332, %v1455
        %v1478 = vmul.f32 %v1338, %v1457
        %v1479 = vmul.f32 %v1344, %v1459
        %v1480 = vmul.f32 %v1350, %v1461
        %v1481 = vmul.f32 %v1356, %v1463
        %v1482 = vmul.f32 %v1362, %v1465
        %v1483 = vmul.f32 %v1368, %v1467
        %v1484 = vadd.f32 %v1468, %v600
        %v1485 = vadd.f32 %v1469, %v603
        %v1486 = vadd.f32 %v1470, %v606
        %v1487 = vadd.f32 %v1471, %v609
        %v1488 = vadd.f32 %v1472, %v612
        %v1489 = vadd.f32 %v1473, %v615
        %v1490 = vadd.f32 %v1474, %v618
        %v1491 = vadd.f32 %v1475, %v621
        %v1492 = vadd.f32 %v1476, %v624
        %v1493 = vadd.f32 %v1477, %v627
        %v1494 = vadd.f32 %v1478, %v630
        %v1495 = vadd.f32 %v1479, %v633
        %v1496 = vadd.f32 %v1480, %v636
        %v1497 = vadd.f32 %v1481, %v639
        %v1498 = vadd.f32 %v1482, %v642
        %v1499 = vadd.f32 %v1483, %v645
        %v1500 = vmul.f32 %v1484, 0.70710677
        %v1501 = vmul.f32 %v1485, 0.70710677
        %v1502 = vmul.f32 %v1486, 0.70710677
        %v1503 = vmul.f32 %v1487, 0.70710677
        %v1504 = vmul.f32 %v1488, 0.70710677
        %v1505 = vmul.f32 %v1489, 0.70710677
        %v1506 = vmul.f32 %v1490, 0.70710677
        %v1507 = vmul.f32 %v1491, 0.70710677
        %v1508 = vmul.f32 %v1492, 0.70710677
        %v1509 = vmul.f32 %v1493, 0.70710677
        %v1510 = vmul.f32 %v1494, 0.70710677
        %v1511 = vmul.f32 %v1495, 0.70710677
        %v1512 = vmul.f32 %v1496, 0.70710677
        %v1513 = vmul.f32 %v1497, 0.70710677
        %v1514 = vmul.f32 %v1498, 0.70710677
        %v1515 = vmul.f32 %v1499, 0.70710677
        %p1516 = scmp.ne.s32.totalorder %s30, 1
        // Predicated region
        $region69: #{tpu_custom_call.1} parent=47 // pred_check
          %p1517 = pneg %p1516
        $region70: #{tpu_custom_call.1} parent=47 // pred_check_branch
          %1519 = sbr.rel (%p1517) target = $region72
        $region71: #{tpu_custom_call.1} parent=47 // pred_region
          %1520 = vst [vmem:[#allocation2 + $0x8] sm:$0xff] %v1500
          %1521 = vst [vmem:[#allocation2 + $0x20] sm:$0xff] %v1501
          %1522 = vst [vmem:[#allocation2 + $0x38] sm:$0xff] %v1502
          %1523 = vst [vmem:[#allocation2 + $0x50] sm:$0xff] %v1503
          %1524 = vst [vmem:[#allocation2 + $0x68] sm:$0xff] %v1504
          %1525 = vst [vmem:[#allocation2 + $0x80] sm:$0xff] %v1505
          %1526 = vst [vmem:[#allocation2 + $0x98] sm:$0xff] %v1506
          %1527 = vst [vmem:[#allocation2 + $0xb0] sm:$0xff] %v1507
          %1528 = vst [vmem:[#allocation2 + $0xc8] sm:$0xff] %v1508
          %1529 = vst [vmem:[#allocation2 + $0xe0] sm:$0xff] %v1509
          %1530 = vst [vmem:[#allocation2 + $0xf8] sm:$0xff] %v1510
          %1531 = vst [vmem:[#allocation2 + $0x110] sm:$0xff] %v1511
          %1532 = vst [vmem:[#allocation2 + $0x128] sm:$0xff] %v1512
          %1533 = vst [vmem:[#allocation2 + $0x140] sm:$0xff] %v1513
          %1534 = vst [vmem:[#allocation2 + $0x158] sm:$0xff] %v1514
          %1535 = vst [vmem:[#allocation2 + $0x170] sm:$0xff] %v1515
        $region72: #{tpu_custom_call.1} parent=47 // pred_fallthru
          _
        %p1536 = scmp.eq.s32.totalorder %s30, 1
        // Predicated region
        $region73: #{tpu_custom_call.1} parent=47 // pred_check
          %p1537 = pneg %p1536
        $region74: #{tpu_custom_call.1} parent=47 // pred_check_branch
          %1539 = sbr.rel (%p1537) target = $region76
        $region75: #{tpu_custom_call.1} parent=47 // pred_region
          %v1540 = vld [vmem:[#allocation3] sm:$0xff]
          %v1541 = vld [vmem:[#allocation3 + $0x8] sm:$0xff]
          %v1542 = vld [vmem:[#allocation3 + $0x10] sm:$0xff]
          %v1543 = vld [vmem:[#allocation3 + $0x18] sm:$0xff]
          %v1544 = vld [vmem:[#allocation3 + $0x20] sm:$0xff]
          %v1545 = vld [vmem:[#allocation3 + $0x28] sm:$0xff]
          %v1546 = vld [vmem:[#allocation3 + $0x30] sm:$0xff]
          %v1547 = vld [vmem:[#allocation3 + $0x38] sm:$0xff]
          %v1548 = vld [vmem:[#allocation3 + $0x40] sm:$0xff]
          %v1549 = vld [vmem:[#allocation3 + $0x48] sm:$0xff]
          %v1550 = vld [vmem:[#allocation3 + $0x50] sm:$0xff]
          %v1551 = vld [vmem:[#allocation3 + $0x58] sm:$0xff]
          %v1552 = vld [vmem:[#allocation3 + $0x60] sm:$0xff]
          %v1553 = vld [vmem:[#allocation3 + $0x68] sm:$0xff]
          %v1554 = vld [vmem:[#allocation3 + $0x70] sm:$0xff]
          %v1555 = vld [vmem:[#allocation3 + $0x78] sm:$0xff]
          %v1556 = vld [vmem:[#allocation9] sm:$0xff]
          %v1557 = vld [vmem:[#allocation9 + $0x8] sm:$0xff]
          %v1558 = vld [vmem:[#allocation9 + $0x10] sm:$0xff]
          %v1559 = vld [vmem:[#allocation9 + $0x18] sm:$0xff]
          %v1560 = vld [vmem:[#allocation9 + $0x20] sm:$0xff]
          %v1561 = vld [vmem:[#allocation9 + $0x28] sm:$0xff]
          %v1562 = vld [vmem:[#allocation9 + $0x30] sm:$0xff]
          %v1563 = vld [vmem:[#allocation9 + $0x38] sm:$0xff]
          %v1564 = vld [vmem:[#allocation9 + $0x40] sm:$0xff]
          %v1565 = vld [vmem:[#allocation9 + $0x48] sm:$0xff]
          %v1566 = vld [vmem:[#allocation9 + $0x50] sm:$0xff]
          %v1567 = vld [vmem:[#allocation9 + $0x58] sm:$0xff]
          %v1568 = vld [vmem:[#allocation9 + $0x60] sm:$0xff]
          %v1569 = vld [vmem:[#allocation9 + $0x68] sm:$0xff]
          %v1570 = vld [vmem:[#allocation9 + $0x70] sm:$0xff]
          %v1571 = vld [vmem:[#allocation9 + $0x78] sm:$0xff]
          %v1572 = vld [vmem:[%s6] sm:$0x1]
          %v1574 = vlaneseq
          %v1575 = vshrl.u32 %v1574, 7
          %v1576 = vsub.s32 0, %v1575
          %v1577 = vrot.slane %v1572, %v1576
          %1579 = vmatprep.subr.mxu0 0.0
          %1580 = vmatpush1.msra.mxu0 %v1556
          %1581 = vmatprep.subr.mxu0 0.0
          %1582 = vmatpush1.msra.mxu0 %v1557
          %1583 = vmatprep.subr.mxu0 0.0
          %1584 = vmatpush1.msra.mxu0 %v1558
          %1585 = vmatprep.subr.mxu0 0.0
          %1586 = vmatpush1.msra.mxu0 %v1559
          %1587 = vmatprep.subr.mxu0 0.0
          %1588 = vmatpush1.msra.mxu0 %v1560
          %1589 = vmatprep.subr.mxu0 0.0
          %1590 = vmatpush1.msra.mxu0 %v1561
          %1591 = vmatprep.subr.mxu0 0.0
          %1592 = vmatpush1.msra.mxu0 %v1562
          %1593 = vmatprep.subr.mxu0 0.0
          %1594 = vmatpush1.msra.mxu0 %v1563
          %1595 = vmatprep.subr.mxu0 0.0
          %1596 = vmatpush1.msra.mxu0 %v1564
          %1597 = vmatprep.subr.mxu0 0.0
          %1598 = vmatpush1.msra.mxu0 %v1565
          %1599 = vmatprep.subr.mxu0 0.0
          %1600 = vmatpush1.msra.mxu0 %v1566
          %1601 = vmatprep.subr.mxu0 0.0
          %1602 = vmatpush1.msra.mxu0 %v1567
          %1603 = vmatprep.subr.mxu0 0.0
          %1604 = vmatpush1.msra.mxu0 %v1568
          %1605 = vmatprep.subr.mxu0 0.0
          %1606 = vmatpush1.msra.mxu0 %v1569
          %1607 = vmatprep.subr.mxu0 0.0
          %1608 = vmatpush1.msra.mxu0 %v1570
          %1609 = vmatprep.subr.mxu0 0.0
          %1610 = vmatpush1.msra.mxu0 %v1571
          %1611 = vmatprep.subr.mxu0 0.0
          %1612 = vmatpush1.msra.mxu0 0.0
          %1613 = vmatprep.subr.mxu0 0.0
          %1614 = vmatpush1.msra.mxu0 0.0
          %1615 = vmatprep.subr.mxu0 0.0
          %1616 = vmatpush1.msra.mxu0 0.0
          %1617 = vmatprep.subr.mxu0 0.0
          %1618 = vmatpush1.msra.mxu0 0.0
          %1619 = vmatprep.subr.mxu0 0.0
          %1620 = vmatpush1.msra.mxu0 0.0
          %1621 = vmatprep.subr.mxu0 0.0
          %1622 = vmatpush1.msra.mxu0 0.0
          %1623 = vmatprep.subr.mxu0 0.0
          %1624 = vmatpush1.msra.mxu0 0.0
          %1625 = vmatprep.subr.mxu0 0.0
          %1626 = vmatpush1.msra.mxu0 0.0
          %1627 = vmatprep.subr.mxu0 0.0
          %1628 = vmatpush1.msra.mxu0 0.0
          %1629 = vmatprep.subr.mxu0 0.0
          %1630 = vmatpush1.msra.mxu0 0.0
          %1631 = vmatprep.subr.mxu0 0.0
          %1632 = vmatpush1.msra.mxu0 0.0
          %1633 = vmatprep.subr.mxu0 0.0
          %1634 = vmatpush1.msra.mxu0 0.0
          %1635 = vmatprep.subr.mxu0 0.0
          %1636 = vmatpush1.msra.mxu0 0.0
          %1637 = vmatprep.subr.mxu0 0.0
          %1638 = vmatpush1.msra.mxu0 0.0
          %1639 = vmatprep.subr.mxu0 0.0
          %1640 = vmatpush1.msra.mxu0 0.0
          %1641 = vmatprep.subr.mxu0 0.0
          %1642 = vmatpush1.msra.mxu0 0.0
          %1643 = vmatprep.mubr.f32.mxu0 0.0
          %1644 = vmatmul.mubr.f32.gmra.mrb[0].mxu0 %v1500
          %v1645 = vpop.f32.mrb[0].mxu0
          %v1646 = vadd.f32 %v1577, %v1645
          %v1647 = vpop.f32.mrb[0].mxu0
          %1648 = vmatprep.mubr.f32.mxu0 0.0
          %1649 = vmatmul.mubr.f32.gmra.mrb[0].mxu0 %v1501
          %v1650 = vpop.f32.mrb[0].mxu0
          %v1651 = vadd.f32 %v1577, %v1650
          %v1652 = vpop.f32.mrb[0].mxu0
          %1653 = vmatprep.mubr.f32.mxu0 0.0
          %1654 = vmatmul.mubr.f32.gmra.mrb[0].mxu0 %v1502
          %v1655 = vpop.f32.mrb[0].mxu0
          %v1656 = vadd.f32 %v1577, %v1655
          %v1657 = vpop.f32.mrb[0].mxu0
          %1658 = vmatprep.mubr.f32.mxu0 0.0
          %1659 = vmatmul.mubr.f32.gmra.mrb[0].mxu0 %v1503
          %v1660 = vpop.f32.mrb[0].mxu0
          %v1661 = vadd.f32 %v1577, %v1660
          %v1662 = vpop.f32.mrb[0].mxu0
          %1663 = vmatprep.mubr.f32.mxu0 0.0
          %1664 = vmatmul.mubr.f32.gmra.mrb[0].mxu0 %v1504
          %v1665 = vpop.f32.mrb[0].mxu0
          %v1666 = vadd.f32 %v1577, %v1665
          %v1667 = vpop.f32.mrb[0].mxu0
          %1668 = vmatprep.mubr.f32.mxu0 0.0
          %1669 = vmatmul.mubr.f32.gmra.mrb[0].mxu0 %v1505
          %v1670 = vpop.f32.mrb[0].mxu0
          %v1671 = vadd.f32 %v1577, %v1670
          %v1672 = vpop.f32.mrb[0].mxu0
          %1673 = vmatprep.mubr.f32.mxu0 0.0
          %1674 = vmatmul.mubr.f32.gmra.mrb[0].mxu0 %v1506
          %v1675 = vpop.f32.mrb[0].mxu0
          %v1676 = vadd.f32 %v1577, %v1675
          %v1677 = vpop.f32.mrb[0].mxu0
          %1678 = vmatprep.mubr.f32.mxu0 0.0
          %1679 = vmatmul.mubr.f32.gmra.mrb[0].mxu0 %v1507
          %v1680 = vpop.f32.mrb[0].mxu0
          %v1681 = vadd.f32 %v1577, %v1680
          %v1682 = vpop.f32.mrb[0].mxu0
          %1683 = vmatprep.mubr.f32.mxu0 0.0
          %1684 = vmatmul.mubr.f32.gmra.mrb[0].mxu0 %v1508
          %v1685 = vpop.f32.mrb[0].mxu0
          %v1686 = vadd.f32 %v1577, %v1685
          %v1687 = vpop.f32.mrb[0].mxu0
          %1688 = vmatprep.mubr.f32.mxu0 0.0
          %1689 = vmatmul.mubr.f32.gmra.mrb[0].mxu0 %v1509
          %v1690 = vpop.f32.mrb[0].mxu0
          %v1691 = vadd.f32 %v1577, %v1690
          %v1692 = vpop.f32.mrb[0].mxu0
          %1693 = vmatprep.mubr.f32.mxu0 0.0
          %1694 = vmatmul.mubr.f32.gmra.mrb[0].mxu0 %v1510
          %v1695 = vpop.f32.mrb[0].mxu0
          %v1696 = vadd.f32 %v1577, %v1695
          %v1697 = vpop.f32.mrb[0].mxu0
          %1698 = vmatprep.mubr.f32.mxu0 0.0
          %1699 = vmatmul.mubr.f32.gmra.mrb[0].mxu0 %v1511
          %v1700 = vpop.f32.mrb[0].mxu0
          %v1701 = vadd.f32 %v1577, %v1700
          %v1702 = vpop.f32.mrb[0].mxu0
          %1703 = vmatprep.mubr.f32.mxu0 0.0
          %1704 = vmatmul.mubr.f32.gmra.mrb[0].mxu0 %v1512
          %v1705 = vpop.f32.mrb[0].mxu0
          %v1706 = vadd.f32 %v1577, %v1705
          %v1707 = vpop.f32.mrb[0].mxu0
          %1708 = vmatprep.mubr.f32.mxu0 0.0
          %1709 = vmatmul.mubr.f32.gmra.mrb[0].mxu0 %v1513
          %v1710 = vpop.f32.mrb[0].mxu0
          %v1711 = vadd.f32 %v1577, %v1710
          %v1712 = vpop.f32.mrb[0].mxu0
          %1713 = vmatprep.mubr.f32.mxu0 0.0
          %1714 = vmatmul.mubr.f32.gmra.mrb[0].mxu0 %v1514
          %v1715 = vpop.f32.mrb[0].mxu0
          %v1716 = vadd.f32 %v1577, %v1715
          %v1717 = vpop.f32.mrb[0].mxu0
          %1718 = vmatprep.mubr.f32.mxu0 0.0
          %1719 = vmatmul.mubr.f32.gmra.mrb[0].mxu0 %v1515
          %v1720 = vpop.f32.mrb[0].mxu0
          %v1721 = vadd.f32 %v1577, %v1720
          %v1722 = vpop.f32.mrb[0].mxu0
          %1723 = vdwg.mxu0
          %1724 = vst [vmem:[#allocation11] sm:$0xff] %v1646
          %1725 = vst [vmem:[#allocation11 + $0x8] sm:$0xff] %v1651
          %1726 = vst [vmem:[#allocation11 + $0x10] sm:$0xff] %v1656
          %1727 = vst [vmem:[#allocation11 + $0x18] sm:$0xff] %v1661
          %1728 = vst [vmem:[#allocation11 + $0x20] sm:$0xff] %v1666
          %1729 = vst [vmem:[#allocation11 + $0x28] sm:$0xff] %v1671
          %1730 = vst [vmem:[#allocation11 + $0x30] sm:$0xff] %v1676
          %1731 = vst [vmem:[#allocation11 + $0x38] sm:$0xff] %v1681
          %1732 = vst [vmem:[#allocation11 + $0x40] sm:$0xff] %v1686
          %1733 = vst [vmem:[#allocation11 + $0x48] sm:$0xff] %v1691
          %1734 = vst [vmem:[#allocation11 + $0x50] sm:$0xff] %v1696
          %1735 = vst [vmem:[#allocation11 + $0x58] sm:$0xff] %v1701
          %1736 = vst [vmem:[#allocation11 + $0x60] sm:$0xff] %v1706
          %1737 = vst [vmem:[#allocation11 + $0x68] sm:$0xff] %v1711
          %1738 = vst [vmem:[#allocation11 + $0x70] sm:$0xff] %v1716
          %1739 = vst [vmem:[#allocation11 + $0x78] sm:$0xff] %v1721
          %v1740 = vadd.f32 %v1646, %v1540
          %v1741 = vadd.f32 %v1651, %v1541
          %v1742 = vadd.f32 %v1656, %v1542
          %v1743 = vadd.f32 %v1661, %v1543
          %v1744 = vadd.f32 %v1666, %v1544
          %v1745 = vadd.f32 %v1671, %v1545
          %v1746 = vadd.f32 %v1676, %v1546
          %v1747 = vadd.f32 %v1681, %v1547
          %v1748 = vadd.f32 %v1686, %v1548
          %v1749 = vadd.f32 %v1691, %v1549
          %v1750 = vadd.f32 %v1696, %v1550
          %v1751 = vadd.f32 %v1701, %v1551
          %v1752 = vadd.f32 %v1706, %v1552
          %v1753 = vadd.f32 %v1711, %v1553
          %v1754 = vadd.f32 %v1716, %v1554
          %v1755 = vadd.f32 %v1721, %v1555
          %v1756 = vmul.f32 %v1740, 0.70710677
          %v1757 = vmul.f32 %v1741, 0.70710677
          %v1758 = vmul.f32 %v1742, 0.70710677
          %v1759 = vmul.f32 %v1743, 0.70710677
          %v1760 = vmul.f32 %v1744, 0.70710677
          %v1761 = vmul.f32 %v1745, 0.70710677
          %v1762 = vmul.f32 %v1746, 0.70710677
          %v1763 = vmul.f32 %v1747, 0.70710677
          %v1764 = vmul.f32 %v1748, 0.70710677
          %v1765 = vmul.f32 %v1749, 0.70710677
          %v1766 = vmul.f32 %v1750, 0.70710677
          %v1767 = vmul.f32 %v1751, 0.70710677
          %v1768 = vmul.f32 %v1752, 0.70710677
          %v1769 = vmul.f32 %v1753, 0.70710677
          %v1770 = vmul.f32 %v1754, 0.70710677
          %v1771 = vmul.f32 %v1755, 0.70710677
          %1772 = vst [vmem:[#allocation12] sm:$0xff] %v1756
          %1773 = vst [vmem:[#allocation12 + $0x8] sm:$0xff] %v1757
          %1774 = vst [vmem:[#allocation12 + $0x10] sm:$0xff] %v1758
          %1775 = vst [vmem:[#allocation12 + $0x18] sm:$0xff] %v1759
          %1776 = vst [vmem:[#allocation12 + $0x20] sm:$0xff] %v1760
          %1777 = vst [vmem:[#allocation12 + $0x28] sm:$0xff] %v1761
          %1778 = vst [vmem:[#allocation12 + $0x30] sm:$0xff] %v1762
          %1779 = vst [vmem:[#allocation12 + $0x38] sm:$0xff] %v1763
          %1780 = vst [vmem:[#allocation12 + $0x40] sm:$0xff] %v1764
          %1781 = vst [vmem:[#allocation12 + $0x48] sm:$0xff] %v1765
          %1782 = vst [vmem:[#allocation12 + $0x50] sm:$0xff] %v1766
          %1783 = vst [vmem:[#allocation12 + $0x58] sm:$0xff] %v1767
          %1784 = vst [vmem:[#allocation12 + $0x60] sm:$0xff] %v1768
          %1785 = vst [vmem:[#allocation12 + $0x68] sm:$0xff] %v1769
          %1786 = vst [vmem:[#allocation12 + $0x70] sm:$0xff] %v1770
          %1787 = vst [vmem:[#allocation12 + $0x78] sm:$0xff] %v1771
        $region76: #{tpu_custom_call.1} parent=47 // pred_fallthru
          _
        // Predicated region
        $region77: #{tpu_custom_call.1} parent=47 // pred_check
          %p1788 = pneg %p207
        $region78: #{tpu_custom_call.1} parent=47 // pred_check_branch
          %1790 = sbr.rel (%p1788) target = $region80
        $region79: #{tpu_custom_call.1} parent=47 // pred_region
          %s1791 = smul.u32 16, %s29
          %s1793 = ssub.s32 2048, 2048
          %1794 = vsyncadd [#allocation5], %s1793
          %s1795 = smul.addr %s1791, 128
          %s1796 = scalar_lea.hbm %s7, %s1795
          %s1797 = sshll.u32 [#allocation11], 4
          %s1798 = int_to_ptr.vmem [resolvable:$true] %s1797
          %1803 = dma.vmem_to_hbm [thread:$0]  %s1798, 2048, %s1796, [#allocation5], 128, 128, 8
        $region80: #{tpu_custom_call.1} parent=47 // pred_fallthru
          _
        // Predicated region
        $region81: #{tpu_custom_call.1} parent=47 // pred_check
          %p1804 = pneg %p233
        $region82: #{tpu_custom_call.1} parent=47 // pred_check_branch
          %1806 = sbr.rel (%p1804) target = $region84
        $region83: #{tpu_custom_call.1} parent=47 // pred_region
          %s1807 = smul.u32 16, %s29
          %s1809 = ssub.s32 2048, 2048
          %1810 = vsyncadd [#allocation13], %s1809
          %s1811 = smul.addr %s1807, 128
          %s1812 = scalar_lea.hbm %s8, %s1811
          %s1813 = sshll.u32 [#allocation12], 4
          %s1814 = int_to_ptr.vmem [resolvable:$true] %s1813
          %1819 = dma.vmem_to_hbm [thread:$0]  %s1814, 2048, %s1812, [#allocation13], 128, 128, 8
        $region84: #{tpu_custom_call.1} parent=47 // pred_fallthru
          _
        // Predicated region
        $region85: #{tpu_custom_call.1} parent=47 // pred_check
          %p1820 = pneg %p207
        $region86: #{tpu_custom_call.1} parent=47 // pred_check_branch
          %1822 = sbr.rel (%p1820) target = $region88
        $region87: #{tpu_custom_call.1} parent=47 // pred_region
          %1823 = dma.done [#allocation5], 2048
        $region88: #{tpu_custom_call.1} parent=47 // pred_fallthru
          _
        // Predicated region
        $region89: #{tpu_custom_call.1} parent=47 // pred_check
          %p1824 = pneg %p233
        $region90: #{tpu_custom_call.1} parent=47 // pred_check_branch
          %1826 = sbr.rel (%p1824) target = $region92
        $region91: #{tpu_custom_call.1} parent=47 // pred_region
          %1827 = dma.done [#allocation13], 2048
        $region92: #{tpu_custom_call.1} parent=47 // pred_fallthru
          _
      $region48: #{tpu_custom_call.1} parent=5 // pred_fallthru
        _
      %p1828 = scmp.le.s32.totalorder 2, %s20
      // Predicated region
      $region93: #{tpu_custom_call.1} parent=5 // pred_check
        %p1829 = pneg %p1828
      $region94: #{tpu_custom_call.1} parent=5 // pred_check_branch
        %1831 = sbr.rel (%p1829) target = $region96
      $region95: #{tpu_custom_call.1} parent=5 // pred_region
        %s1832 = ssub.s32 %s20, 2
      $region96: #{tpu_custom_call.1} parent=5 // pred_fallthru
        _
    $region6: #{tpu_custom_call.1} parent=1 // loop_footer
      %s24 = sadd.s32 1, %s20
    $region7: #{tpu_custom_call.1} parent=1 // loop_footer_branch
      %19 = sbr.rel target = $region3
    $region8: #{tpu_custom_call.1} parent=1 // loop_exit
      _
    %1833 = vsyncpa [#allocation4], 1
    %s1834 = scalar_lea.sflag [#allocation4], 1
    %1835 = vsyncpa %s1834, 1
    %1836 = vsyncpa [#allocation7], 1
    %1837 = vsyncpa [#allocation10], 1
    %1838 = vsyncpa [#allocation5], 1
    %s1839 = scalar_lea.sflag [#allocation5], 1
    %1840 = vsyncpa %s1839, 1
    %1841 = vsyncpa [#allocation13], 1

</llo_original>
